<compile_context>
chip_gen: v6e
topology: v6e:2x2x1
jax: 0.10.0
libtpu: 0.0.40
codegen_flags: <defaults>
</compile_context>

<pallas_src>
import math
import functools

import jax
import jax.numpy as jnp
from jax.experimental import pallas as pl
from jax.experimental.pallas import tpu as pltpu


# Scoped-VMEM budget: headroom under v7x's 64 MiB physical VMEM, well under
# v5e/v6e's 128 MiB.
_VMEM_LIMIT_BYTES = 48 * 1024 * 1024


def _pick_tile(n, target, quantum):
    """Largest divisor of `n` that is <= target and a multiple of `quantum`.

    Never exceeds `target` when a valid divisor exists (so tiles stay bounded
    for non-divisible dims); falls back to the full dim only when no divisor
    satisfies the Mosaic tiling quantum (then the full-dim block is the only
    legal choice anyway).
    """
    if n <= target:
        return n
    t = (target // quantum) * quantum
    while t >= quantum:
        if n % t == 0:
            return t
        t -= quantum
    return n


# --------------------------------------------------------------------------
# Kernel 1: tiled dense layer  o = x @ W + b
#   bf16 MXU operands, f32 VMEM accumulator, bias added at flush.
# --------------------------------------------------------------------------
def _linear_kernel(x_ref, w_ref, b_ref, o_ref, acc_ref):
    @pl.when(pl.program_id(2) == 0)
    def _init():
        acc_ref[...] = jnp.zeros_like(acc_ref)

    x = x_ref[...].astype(jnp.bfloat16)        # no-op if already bf16
    acc_ref[...] += jnp.dot(x, w_ref[...], preferred_element_type=jnp.float32)

    @pl.when(pl.program_id(2) == pl.num_programs(2) - 1)
    def _flush():
        o_ref[...] = (acc_ref[...] + b_ref[...]).astype(o_ref.dtype)


def linear_pallas(x2d, w, b, *, out_dtype=jnp.float32,
                  tm_target=512, tn_target=512, tk_target=1024):
    """x2d: (M, Din), w: (Din, Dout) bf16, b: (Dout,) f32 -> (M, Dout) out_dtype."""
    m, k = x2d.shape
    n = w.shape[1]
    tm = _pick_tile(m, tm_target, 8)      # second-minor of x / out
    tn = _pick_tile(n, tn_target, 128)    # lane dim of w / b / out
    tk = _pick_tile(k, tk_target, 128)    # lane dim of x, second-minor of w
    grid = (m // tm, n // tn, k // tk)
    return pl.pallas_call(
        _linear_kernel,
        out_shape=jax.ShapeDtypeStruct((m, n), out_dtype),
        grid_spec=pltpu.PrefetchScalarGridSpec(
            num_scalar_prefetch=0,
            grid=grid,
            in_specs=[
                pl.BlockSpec((tm, tk), lambda i, j, kk: (i, kk)),
                pl.BlockSpec((tk, tn), lambda i, j, kk: (kk, j)),
                pl.BlockSpec((1, tn), lambda i, j, kk: (0, j)),
            ],
            out_specs=pl.BlockSpec((tm, tn), lambda i, j, kk: (i, j)),
            scratch_shapes=[pltpu.VMEM((tm, tn), jnp.float32)],
        ),
        compiler_params=pltpu.CompilerParams(
            dimension_semantics=("parallel", "parallel", "arbitrary"),
            vmem_limit_bytes=_VMEM_LIMIT_BYTES,
        ),
    )(x2d, w, b.reshape(1, n))


# --------------------------------------------------------------------------
# Kernel 2: fused multi-head scaled-dot-product attention
#   One grid step handles one (batch, q-tile) for ALL heads.
#   q_up: (B, q_len, D) bf16; kv_up: (B, k_len, 2D) bf16 (K in lanes [0, D),
#   V in lanes [D, 2D)); heads are static lane slices inside the kernel.
#   Outputs: lane-dense context (B, q_len, D) bf16 written once per grid step,
#   and head-0 attention probs (B, q_len, k_len) f32 (the only probs the
#   module returns; the (B, H, S, S) tensor is never materialized).
# --------------------------------------------------------------------------
def _mha_kernel(q_ref, kv_ref, ctx_ref, attn_ref, *,
                head_count, dim_per_head, model_dim):
    q = q_ref[0]     # (tq, D)    bf16 -- 1/sqrt(dph) scale pre-folded into wq/bq
    kv = kv_ref[0]   # (k_len, 2D) bf16

    ctx_parts = []
    attn0 = None
    for h in range(head_count):            # static unroll; all heads per grid step
        lo = h * dim_per_head
        hi = lo + dim_per_head
        q_h = q[:, lo:hi]                              # (tq, dph)     bf16
        k_h = kv[:, lo:hi]                             # (k_len, dph)  bf16
        v_h = kv[:, model_dim + lo:model_dim + hi]     # (k_len, dph)  bf16

        # scores = q_h @ k_h^T: contract last dims of both (no K transpose).
        scores = jax.lax.dot_general(
            q_h, k_h, (((1,), (1,)), ((), ())),
            preferred_element_type=jnp.float32,
        )                                              # (tq, k_len) f32

        m = jnp.max(scores, axis=-1, keepdims=True)
        e = jnp.exp(scores - m)                        # unnormalized probs, in (0, 1]
        s = jnp.sum(e, axis=-1, keepdims=True)
        inv_s = pl.reciprocal(s, approx=True)          # EUP slot, ~free next to exp

        # Normalize AFTER the PV matmul: scale (tq, dph) once, not (tq, k_len).
        ctx_h = jnp.dot(e.astype(v_h.dtype), v_h,
                        preferred_element_type=jnp.float32) * inv_s
        ctx_parts.append(ctx_h)

        if h == 0:
            attn0 = e * inv_s                          # only head-0 probs are emitted

    # Single lane-dense store of the full (tq, D) context slab.
    ctx = jnp.concatenate(ctx_parts, axis=-1)
    ctx_ref[0] = ctx.astype(ctx_ref.dtype)
    attn_ref[0] = attn0.astype(attn_ref.dtype)


def attention_pallas(q_up, kv_up, head_count, *, tq_target=256):
    """q_up: (B, q_len, D) bf16; kv_up: (B, k_len, 2D) bf16.

    Returns (context (B, q_len, D) bf16, head0_attn (B, q_len, k_len) f32).
    """
    b, q_len, d = q_up.shape
    k_len = kv_up.shape[1]
    dph = d // head_count
    tq = _pick_tile(q_len, tq_target, 8)
    grid = (b, q_len // tq)

    kernel = functools.partial(_mha_kernel, head_count=head_count,
                               dim_per_head=dph, model_dim=d)
    return pl.pallas_call(
        kernel,
        out_shape=(
            jax.ShapeDtypeStruct((b, q_len, d), jnp.bfloat16),
            jax.ShapeDtypeStruct((b, q_len, k_len), jnp.float32),
        ),
        grid_spec=pltpu.PrefetchScalarGridSpec(
            num_scalar_prefetch=0,
            grid=grid,
            in_specs=[
                pl.BlockSpec((1, tq, d), lambda bi, qi: (bi, qi, 0)),
                pl.BlockSpec((1, k_len, 2 * d), lambda bi, qi: (bi, 0, 0)),
            ],
            out_specs=[
                pl.BlockSpec((1, tq, d), lambda bi, qi: (bi, qi, 0)),
                pl.BlockSpec((1, tq, k_len), lambda bi, qi: (bi, qi, 0)),
            ],
        ),
        compiler_params=pltpu.CompilerParams(
            dimension_semantics=("parallel", "parallel"),
            vmem_limit_bytes=_VMEM_LIMIT_BYTES,
        ),
    )(q_up, kv_up)


# --------------------------------------------------------------------------
# Parameter prep: fold 1/sqrt(dim_per_head) into wq/bq, cast weights to bf16,
# and build fused K/V weights (D, 2D) for the shared-activation path.
# Biases stay f32 (added to the f32 accumulator at flush).
# --------------------------------------------------------------------------
def prepare_params(raw_params, head_count, model_dim):
    dph = model_dim // head_count
    scale = 1.0 / math.sqrt(dph)
    wk = raw_params["wk"].astype(jnp.bfloat16)
    wv = raw_params["wv"].astype(jnp.bfloat16)
    return {
        "wq": (raw_params["wq"] * scale).astype(jnp.bfloat16),
        "bq": raw_params["bq"] * scale,
        "wk": wk, "bk": raw_params["bk"],
        "wv": wv, "bv": raw_params["bv"],
        "wkv": jnp.concatenate([wk, wv], axis=1),
        "bkv": jnp.concatenate([raw_params["bk"], raw_params["bv"]], axis=0),
        "wo": raw_params["wo"].astype(jnp.bfloat16),
        "bo": raw_params["bo"],
    }


# --------------------------------------------------------------------------
# Full module forward. Glue is reshape-only; intermediates travel as bf16.
# `shared_kv=True` asserts that `key` and `value` are the same tensor (typical
# usage) and fuses their projections into one matmul.
# --------------------------------------------------------------------------
def multi_headed_attention(key, value, query, params, head_count, *, shared_kv=False):
    b, k_len, d = key.shape
    _, q_len, _ = query.shape

    q_up = linear_pallas(query.reshape(b * q_len, d), params["wq"], params["bq"],
                         out_dtype=jnp.bfloat16).reshape(b, q_len, d)

    if shared_kv:
        # Fused K/V projection: the shared activation is read from HBM once and
        # the (B, k_len, 2D) result feeds the attention kernel directly.
        kv_up = linear_pallas(key.reshape(b * k_len, d), params["wkv"], params["bkv"],
                              out_dtype=jnp.bfloat16).reshape(b, k_len, 2 * d)
    else:
        k_up = linear_pallas(key.reshape(b * k_len, d), params["wk"], params["bk"],
                             out_dtype=jnp.bfloat16)
        v_up = linear_pallas(value.reshape(b * k_len, d), params["wv"], params["bv"],
                             out_dtype=jnp.bfloat16)
        kv_up = jnp.concatenate([k_up, v_up], axis=-1).reshape(b, k_len, 2 * d)

    context, top_attn = attention_pallas(q_up, kv_up, head_count)

    output = linear_pallas(context.reshape(b * q_len, d), params["wo"], params["bo"],
                           out_dtype=jnp.float32).reshape(b, q_len, d)
    return output, top_attn


# --------------------------------------------------------------------------
# Pure-JAX f32 reference (matches the PyTorch module, eval dropout, mask=None)
# --------------------------------------------------------------------------
def reference(key, value, query, raw_params, head_count):
    b, k_len, d = key.shape
    _, q_len, _ = query.shape
    dph = d // head_count

    def lin(x, w, bias):
        return x @ w + bias

    def shape(x, length):
        return x.reshape(b, length, head_count, dph).transpose(0, 2, 1, 3)

    k_up = shape(lin(key, raw_params["wk"], raw_params["bk"]), k_len)
    v_up = shape(lin(value, raw_params["wv"], raw_params["bv"]), k_len)
    q_up = shape(lin(query, raw_params["wq"], raw_params["bq"]), q_len) / math.sqrt(dph)
    scores = jnp.einsum("bhqd,bhkd->bhqk", q_up, k_up)
    attn = jax.nn.softmax(scores, axis=-1)
    ctx = jnp.einsum("bhqk,bhkd->bhqd", attn, v_up)
    ctx = ctx.transpose(0, 2, 1, 3).reshape(b, q_len, d)
    out = lin(ctx, raw_params["wo"], raw_params["bo"])
    return out, attn[:, 0, :, :]


# --------------------------------------------------------------------------
if __name__ == "__main__":
    head_count = 4
    model_dim = 64
    batch = 2
    q_len = 16
    k_len = 16

    root = jax.random.PRNGKey(0)
    keys = jax.random.split(root, 11)
    bound = 1.0 / math.sqrt(model_dim)  # nn.Linear default init range

    def u(k, shape):
        return jax.random.uniform(k, shape, jnp.float32, -bound, bound)

    raw_params = {
        "wk": u(keys[0], (model_dim, model_dim)), "bk": u(keys[1], (model_dim,)),
        "wv": u(keys[2], (model_dim, model_dim)), "bv": u(keys[3], (model_dim,)),
        "wq": u(keys[4], (model_dim, model_dim)), "bq": u(keys[5], (model_dim,)),
        "wo": u(keys[6], (model_dim, model_dim)), "bo": u(keys[7], (model_dim,)),
    }
    params = prepare_params(raw_params, head_count, model_dim)

    key_in = jax.random.normal(keys[8], (batch, k_len, model_dim), jnp.float32)
    value_in = jax.random.normal(keys[9], (batch, k_len, model_dim), jnp.float32)
    query_in = jax.random.normal(keys[10], (batch, q_len, model_dim), jnp.float32)

    mha = jax.jit(multi_headed_attention, static_argnames=("head_count", "shared_kv"))

    # bf16 MXU operands / bf16 intermediates -> tolerance loosened from 1e-4.
    TOL = dict(atol=2e-2, rtol=2e-2)

    # 1) Fused K/V path (key and value are the same tensor -- typical usage).
    out_f, attn_f = mha(key_in, key_in, query_in, params,
                        head_count=head_count, shared_kv=True)
    out_f = jax.block_until_ready(out_f)
    attn_f = jax.block_until_ready(attn_f)
    ref_out_f, ref_attn_f = reference(key_in, key_in, query_in, raw_params, head_count)
    assert out_f.shape == (batch, q_len, model_dim)
    assert attn_f.shape == (batch, q_len, k_len)
    assert jnp.allclose(out_f, ref_out_f, **TOL)
    assert jnp.allclose(attn_f, ref_attn_f, **TOL)

    # 2) Separate K/V path (distinct key / value tensors).
    out_s, attn_s = mha(key_in, value_in, query_in, params,
                        head_count=head_count, shared_kv=False)
    out_s = jax.block_until_ready(out_s)
    attn_s = jax.block_until_ready(attn_s)
    ref_out_s, ref_attn_s = reference(key_in, value_in, query_in, raw_params, head_count)
    assert out_s.shape == (batch, q_len, model_dim)
    assert attn_s.shape == (batch, q_len, k_len)
    assert jnp.allclose(out_s, ref_out_s, **TOL)
    assert jnp.allclose(attn_s, ref_attn_s, **TOL)

    print("KERNEL_OK")
</pallas_src>

<mosaic_0001>
module attributes {stable_mosaic.version = 11 : i64} {
  func.func @_linear_kernel(%arg0: i32, %arg1: i32, %arg2: i32, %arg3: memref<32x64xf32, #tpu.memory_space<vmem>>, %arg4: memref<64x128xbf16, #tpu.memory_space<vmem>>, %arg5: memref<1x128xf32, #tpu.memory_space<vmem>>, %arg6: memref<32x128xbf16, #tpu.memory_space<vmem>>, %arg7: memref<32x128xf32, #tpu.memory_space<vmem>>) attributes {dimension_semantics = [#tpu.dimension_semantics<parallel>, #tpu.dimension_semantics<parallel>, #tpu.dimension_semantics<arbitrary>], iteration_bounds = array<i64: 1, 1, 1>, scalar_prefetch = 0 : i64, scratch_operands = 1 : i64, tpu.core_type = #tpu.core_type<tc>, window_params = [{transform_indices = @transform_0, window_bounds = array<i64: 32, 64>}, {transform_indices = @transform_1, window_bounds = array<i64: 64, 128>}, {transform_indices = @transform_2, window_bounds = array<i64: 1, 128>}, {transform_indices = @transform_3, window_bounds = array<i64: 32, 128>}]} {
    %c0_i32 = arith.constant 0 : i32
    %0 = arith.cmpi eq, %arg2, %c0_i32 : i32
    %1 = arith.extui %0 : i1 to i32
    %c0_i32_0 = arith.constant 0 : i32
    %2 = arith.cmpi ne, %1, %c0_i32_0 : i32
    scf.if %2 {
      %cst_10 = arith.constant 0.000000e+00 : f32
      %13 = vector.broadcast %cst_10 : f32 to vector<32x128xf32>
      %c0_11 = arith.constant 0 : index
      %c0_12 = arith.constant 0 : index
      %14 = vector.load %arg7[%c0_11, %c0_12] : memref<32x128xf32, #tpu.memory_space<vmem>>, vector<32x128xf32>
      tpu.vector_store %arg7[%c0_11, %c0_12], %13 {strides = array<i32>} : memref<32x128xf32, #tpu.memory_space<vmem>>, vector<32x128xf32>,
    } else {
    }
    %c0 = arith.constant 0 : index
    %c0_1 = arith.constant 0 : index
    %3 = vector.load %arg3[%c0, %c0_1] : memref<32x64xf32, #tpu.memory_space<vmem>>, vector<32x64xf32>
    %4 = arith.truncf %3 : vector<32x64xf32> to vector<32x64xbf16>
    %c0_2 = arith.constant 0 : index
    %c0_3 = arith.constant 0 : index
    %5 = vector.load %arg7[%c0_2, %c0_3] : memref<32x128xf32, #tpu.memory_space<vmem>>, vector<32x128xf32>
    %c0_4 = arith.constant 0 : index
    %c0_5 = arith.constant 0 : index
    %6 = vector.load %arg4[%c0_4, %c0_5] : memref<64x128xbf16, #tpu.memory_space<vmem>>, vector<64x128xbf16>
    %cst = arith.constant dense<0.000000e+00> : vector<32x128xf32>
    %7 = tpu.matmul %4, %6, %cst {dimension_numbers = #tpu.dot_dimension_numbers<[1], [0], [0], [1], [0, 0, 1, 1], [], []>} : vector<32x64xbf16>, vector<64x128xbf16>, vector<32x128xf32> -> vector<32x128xf32>
    %8 = arith.addf %5, %7 : vector<32x128xf32>
    %c0_6 = arith.constant 0 : index
    %c0_7 = arith.constant 0 : index
    %9 = vector.load %arg7[%c0_6, %c0_7] : memref<32x128xf32, #tpu.memory_space<vmem>>, vector<32x128xf32>
    tpu.vector_store %arg7[%c0_6, %c0_7], %8 {strides = array<i32>} : memref<32x128xf32, #tpu.memory_space<vmem>>, vector<32x128xf32>,
    %c0_i32_8 = arith.constant 0 : i32
    %10 = arith.cmpi eq, %arg2, %c0_i32_8 : i32
    %11 = arith.extui %10 : i1 to i32
    %c0_i32_9 = arith.constant 0 : i32
    %12 = arith.cmpi ne, %11, %c0_i32_9 : i32
    scf.if %12 {
      %c0_10 = arith.constant 0 : index
      %c0_11 = arith.constant 0 : index
      %13 = vector.load %arg7[%c0_10, %c0_11] : memref<32x128xf32, #tpu.memory_space<vmem>>, vector<32x128xf32>
      %c0_12 = arith.constant 0 : index
      %c0_13 = arith.constant 0 : index
      %14 = vector.load %arg5[%c0_12, %c0_13] : memref<1x128xf32, #tpu.memory_space<vmem>>, vector<1x128xf32>
      %15 = vector.broadcast %14 : vector<1x128xf32> to vector<32x128xf32>
      %16 = arith.addf %13, %15 : vector<32x128xf32>
      %17 = arith.truncf %16 : vector<32x128xf32> to vector<32x128xbf16>
      %c0_14 = arith.constant 0 : index
      %c0_15 = arith.constant 0 : index
      %18 = vector.load %arg6[%c0_14, %c0_15] : memref<32x128xbf16, #tpu.memory_space<vmem>>, vector<32x128xbf16>
      tpu.vector_store %arg6[%c0_14, %c0_15], %17 {strides = array<i32>} : memref<32x128xbf16, #tpu.memory_space<vmem>>, vector<32x128xbf16>,
    } else {
    }
    return
  }
  func.func @transform_0(%arg0: i32, %arg1: i32, %arg2: i32) -> (i32, i32) {
    %c0_i32 = arith.constant 0 : i32
    return %arg0, %arg2 : i32, i32
  }
  func.func @transform_1(%arg0: i32, %arg1: i32, %arg2: i32) -> (i32, i32) {
    %c0_i32 = arith.constant 0 : i32
    return %arg2, %arg1 : i32, i32
  }
  func.func @transform_2(%arg0: i32, %arg1: i32, %arg2: i32) -> (i32, i32) {
    %c0_i32 = arith.constant 0 : i32
    %c0_i32_0 = arith.constant 0 : i32
    return %c0_i32, %arg1 : i32, i32
  }
  func.func @transform_3(%arg0: i32, %arg1: i32, %arg2: i32) -> (i32, i32) {
    %c0_i32 = arith.constant 0 : i32
    return %arg0, %arg1 : i32, i32
  }
}

module attributes {stable_mosaic.version = 11 : i64} {
  func.func @_linear_kernel(%arg0: i32, %arg1: i32, %arg2: i32, %arg3: memref<32x64xf32, #tpu.memory_space<vmem>>, %arg4: memref<64x64xbf16, #tpu.memory_space<vmem>>, %arg5: memref<1x64xf32, #tpu.memory_space<vmem>>, %arg6: memref<32x64xbf16, #tpu.memory_space<vmem>>, %arg7: memref<32x64xf32, #tpu.memory_space<vmem>>) attributes {dimension_semantics = [#tpu.dimension_semantics<parallel>, #tpu.dimension_semantics<parallel>, #tpu.dimension_semantics<arbitrary>], iteration_bounds = array<i64: 1, 1, 1>, scalar_prefetch = 0 : i64, scratch_operands = 1 : i64, tpu.core_type = #tpu.core_type<tc>, window_params = [{transform_indices = @transform_0, window_bounds = array<i64: 32, 64>}, {transform_indices = @transform_1, window_bounds = array<i64: 64, 64>}, {transform_indices = @transform_2, window_bounds = array<i64: 1, 64>}, {transform_indices = @transform_3, window_bounds = array<i64: 32, 64>}]} {
    %c0_i32 = arith.constant 0 : i32
    %0 = arith.cmpi eq, %arg2, %c0_i32 : i32
    %1 = arith.extui %0 : i1 to i32
    %c0_i32_0 = arith.constant 0 : i32
    %2 = arith.cmpi ne, %1, %c0_i32_0 : i32
    scf.if %2 {
      %cst_10 = arith.constant 0.000000e+00 : f32
      %13 = vector.broadcast %cst_10 : f32 to vector<32x64xf32>
      %c0_11 = arith.constant 0 : index
      %c0_12 = arith.constant 0 : index
      %14 = vector.load %arg7[%c0_11, %c0_12] : memref<32x64xf32, #tpu.memory_space<vmem>>, vector<32x64xf32>
      tpu.vector_store %arg7[%c0_11, %c0_12], %13 {strides = array<i32>} : memref<32x64xf32, #tpu.memory_space<vmem>>, vector<32x64xf32>,
    } else {
    }
    %c0 = arith.constant 0 : index
    %c0_1 = arith.constant 0 : index
    %3 = vector.load %arg3[%c0, %c0_1] : memref<32x64xf32, #tpu.memory_space<vmem>>, vector<32x64xf32>
    %4 = arith.truncf %3 : vector<32x64xf32> to vector<32x64xbf16>
    %c0_2 = arith.constant 0 : index
    %c0_3 = arith.constant 0 : index
    %5 = vector.load %arg7[%c0_2, %c0_3] : memref<32x64xf32, #tpu.memory_space<vmem>>, vector<32x64xf32>
    %c0_4 = arith.constant 0 : index
    %c0_5 = arith.constant 0 : index
    %6 = vector.load %arg4[%c0_4, %c0_5] : memref<64x64xbf16, #tpu.memory_space<vmem>>, vector<64x64xbf16>
    %cst = arith.constant dense<0.000000e+00> : vector<32x64xf32>
    %7 = tpu.matmul %4, %6, %cst {dimension_numbers = #tpu.dot_dimension_numbers<[1], [0], [0], [1], [0, 0, 1, 1], [], []>} : vector<32x64xbf16>, vector<64x64xbf16>, vector<32x64xf32> -> vector<32x64xf32>
    %8 = arith.addf %5, %7 : vector<32x64xf32>
    %c0_6 = arith.constant 0 : index
    %c0_7 = arith.constant 0 : index
    %9 = vector.load %arg7[%c0_6, %c0_7] : memref<32x64xf32, #tpu.memory_space<vmem>>, vector<32x64xf32>
    tpu.vector_store %arg7[%c0_6, %c0_7], %8 {strides = array<i32>} : memref<32x64xf32, #tpu.memory_space<vmem>>, vector<32x64xf32>,
    %c0_i32_8 = arith.constant 0 : i32
    %10 = arith.cmpi eq, %arg2, %c0_i32_8 : i32
    %11 = arith.extui %10 : i1 to i32
    %c0_i32_9 = arith.constant 0 : i32
    %12 = arith.cmpi ne, %11, %c0_i32_9 : i32
    scf.if %12 {
      %c0_10 = arith.constant 0 : index
      %c0_11 = arith.constant 0 : index
      %13 = vector.load %arg7[%c0_10, %c0_11] : memref<32x64xf32, #tpu.memory_space<vmem>>, vector<32x64xf32>
      %c0_12 = arith.constant 0 : index
      %c0_13 = arith.constant 0 : index
      %14 = vector.load %arg5[%c0_12, %c0_13] : memref<1x64xf32, #tpu.memory_space<vmem>>, vector<1x64xf32>
      %15 = vector.broadcast %14 : vector<1x64xf32> to vector<32x64xf32>
      %16 = arith.addf %13, %15 : vector<32x64xf32>
      %17 = arith.truncf %16 : vector<32x64xf32> to vector<32x64xbf16>
      %c0_14 = arith.constant 0 : index
      %c0_15 = arith.constant 0 : index
      %18 = vector.load %arg6[%c0_14, %c0_15] : memref<32x64xbf16, #tpu.memory_space<vmem>>, vector<32x64xbf16>
      tpu.vector_store %arg6[%c0_14, %c0_15], %17 {strides = array<i32>} : memref<32x64xbf16, #tpu.memory_space<vmem>>, vector<32x64xbf16>,
    } else {
    }
    return
  }
  func.func @transform_0(%arg0: i32, %arg1: i32, %arg2: i32) -> (i32, i32) {
    %c0_i32 = arith.constant 0 : i32
    return %arg0, %arg2 : i32, i32
  }
  func.func @transform_1(%arg0: i32, %arg1: i32, %arg2: i32) -> (i32, i32) {
    %c0_i32 = arith.constant 0 : i32
    return %arg2, %arg1 : i32, i32
  }
  func.func @transform_2(%arg0: i32, %arg1: i32, %arg2: i32) -> (i32, i32) {
    %c0_i32 = arith.constant 0 : i32
    %c0_i32_0 = arith.constant 0 : i32
    return %c0_i32, %arg1 : i32, i32
  }
  func.func @transform_3(%arg0: i32, %arg1: i32, %arg2: i32) -> (i32, i32) {
    %c0_i32 = arith.constant 0 : i32
    return %arg0, %arg1 : i32, i32
  }
}

module attributes {stable_mosaic.version = 11 : i64} {
  func.func @_linear_kernel(%arg0: i32, %arg1: i32, %arg2: i32, %arg3: memref<32x64xbf16, #tpu.memory_space<vmem>>, %arg4: memref<64x64xbf16, #tpu.memory_space<vmem>>, %arg5: memref<1x64xf32, #tpu.memory_space<vmem>>, %arg6: memref<32x64xf32, #tpu.memory_space<vmem>>, %arg7: memref<32x64xf32, #tpu.memory_space<vmem>>) attributes {dimension_semantics = [#tpu.dimension_semantics<parallel>, #tpu.dimension_semantics<parallel>, #tpu.dimension_semantics<arbitrary>], iteration_bounds = array<i64: 1, 1, 1>, scalar_prefetch = 0 : i64, scratch_operands = 1 : i64, tpu.core_type = #tpu.core_type<tc>, window_params = [{transform_indices = @transform_0, window_bounds = array<i64: 32, 64>}, {transform_indices = @transform_1, window_bounds = array<i64: 64, 64>}, {transform_indices = @transform_2, window_bounds = array<i64: 1, 64>}, {transform_indices = @transform_3, window_bounds = array<i64: 32, 64>}]} {
    %c0_i32 = arith.constant 0 : i32
    %0 = arith.cmpi eq, %arg2, %c0_i32 : i32
    %1 = arith.extui %0 : i1 to i32
    %c0_i32_0 = arith.constant 0 : i32
    %2 = arith.cmpi ne, %1, %c0_i32_0 : i32
    scf.if %2 {
      %cst_10 = arith.constant 0.000000e+00 : f32
      %12 = vector.broadcast %cst_10 : f32 to vector<32x64xf32>
      %c0_11 = arith.constant 0 : index
      %c0_12 = arith.constant 0 : index
      %13 = vector.load %arg7[%c0_11, %c0_12] : memref<32x64xf32, #tpu.memory_space<vmem>>, vector<32x64xf32>
      tpu.vector_store %arg7[%c0_11, %c0_12], %12 {strides = array<i32>} : memref<32x64xf32, #tpu.memory_space<vmem>>, vector<32x64xf32>,
    } else {
    }
    %c0 = arith.constant 0 : index
    %c0_1 = arith.constant 0 : index
    %3 = vector.load %arg3[%c0, %c0_1] : memref<32x64xbf16, #tpu.memory_space<vmem>>, vector<32x64xbf16>
    %c0_2 = arith.constant 0 : index
    %c0_3 = arith.constant 0 : index
    %4 = vector.load %arg7[%c0_2, %c0_3] : memref<32x64xf32, #tpu.memory_space<vmem>>, vector<32x64xf32>
    %c0_4 = arith.constant 0 : index
    %c0_5 = arith.constant 0 : index
    %5 = vector.load %arg4[%c0_4, %c0_5] : memref<64x64xbf16, #tpu.memory_space<vmem>>, vector<64x64xbf16>
    %cst = arith.constant dense<0.000000e+00> : vector<32x64xf32>
    %6 = tpu.matmul %3, %5, %cst {dimension_numbers = #tpu.dot_dimension_numbers<[1], [0], [0], [1], [0, 0, 1, 1], [], []>} : vector<32x64xbf16>, vector<64x64xbf16>, vector<32x64xf32> -> vector<32x64xf32>
    %7 = arith.addf %4, %6 : vector<32x64xf32>
    %c0_6 = arith.constant 0 : index
    %c0_7 = arith.constant 0 : index
    %8 = vector.load %arg7[%c0_6, %c0_7] : memref<32x64xf32, #tpu.memory_space<vmem>>, vector<32x64xf32>
    tpu.vector_store %arg7[%c0_6, %c0_7], %7 {strides = array<i32>} : memref<32x64xf32, #tpu.memory_space<vmem>>, vector<32x64xf32>,
    %c0_i32_8 = arith.constant 0 : i32
    %9 = arith.cmpi eq, %arg2, %c0_i32_8 : i32
    %10 = arith.extui %9 : i1 to i32
    %c0_i32_9 = arith.constant 0 : i32
    %11 = arith.cmpi ne, %10, %c0_i32_9 : i32
    scf.if %11 {
      %c0_10 = arith.constant 0 : index
      %c0_11 = arith.constant 0 : index
      %12 = vector.load %arg7[%c0_10, %c0_11] : memref<32x64xf32, #tpu.memory_space<vmem>>, vector<32x64xf32>
      %c0_12 = arith.constant 0 : index
      %c0_13 = arith.constant 0 : index
      %13 = vector.load %arg5[%c0_12, %c0_13] : memref<1x64xf32, #tpu.memory_space<vmem>>, vector<1x64xf32>
      %14 = vector.broadcast %13 : vector<1x64xf32> to vector<32x64xf32>
      %15 = arith.addf %12, %14 : vector<32x64xf32>
      %c0_14 = arith.constant 0 : index
      %c0_15 = arith.constant 0 : index
      %16 = vector.load %arg6[%c0_14, %c0_15] : memref<32x64xf32, #tpu.memory_space<vmem>>, vector<32x64xf32>
      tpu.vector_store %arg6[%c0_14, %c0_15], %15 {strides = array<i32>} : memref<32x64xf32, #tpu.memory_space<vmem>>, vector<32x64xf32>,
    } else {
    }
    return
  }
  func.func @transform_0(%arg0: i32, %arg1: i32, %arg2: i32) -> (i32, i32) {
    %c0_i32 = arith.constant 0 : i32
    return %arg0, %arg2 : i32, i32
  }
  func.func @transform_1(%arg0: i32, %arg1: i32, %arg2: i32) -> (i32, i32) {
    %c0_i32 = arith.constant 0 : i32
    return %arg2, %arg1 : i32, i32
  }
  func.func @transform_2(%arg0: i32, %arg1: i32, %arg2: i32) -> (i32, i32) {
    %c0_i32 = arith.constant 0 : i32
    %c0_i32_0 = arith.constant 0 : i32
    return %c0_i32, %arg1 : i32, i32
  }
  func.func @transform_3(%arg0: i32, %arg1: i32, %arg2: i32) -> (i32, i32) {
    %c0_i32 = arith.constant 0 : i32
    return %arg0, %arg1 : i32, i32
  }
}

module attributes {stable_mosaic.version = 11 : i64} {
  func.func @_mha_kernel(%arg0: i32, %arg1: i32, %arg2: memref<1x16x64xbf16, #tpu.memory_space<vmem>>, %arg3: memref<1x16x128xbf16, #tpu.memory_space<vmem>>, %arg4: memref<1x16x64xbf16, #tpu.memory_space<vmem>>, %arg5: memref<1x16x16xf32, #tpu.memory_space<vmem>>) attributes {dimension_semantics = [#tpu.dimension_semantics<parallel>, #tpu.dimension_semantics<parallel>], iteration_bounds = array<i64: 2, 1>, scalar_prefetch = 0 : i64, scratch_operands = 0 : i64, tpu.core_type = #tpu.core_type<tc>, window_params = [{transform_indices = @transform_0, window_bounds = array<i64: 1, 16, 64>}, {transform_indices = @transform_1, window_bounds = array<i64: 1, 16, 128>}, {transform_indices = @transform_2, window_bounds = array<i64: 1, 16, 64>}, {transform_indices = @transform_3, window_bounds = array<i64: 1, 16, 16>}]} {
    %c0 = arith.constant 0 : index
    %c0_0 = arith.constant 0 : index
    %c0_1 = arith.constant 0 : index
    %0 = vector.load %arg2[%c0, %c0_0, %c0_1] : memref<1x16x64xbf16, #tpu.memory_space<vmem>>, vector<1x16x64xbf16>
    %1 = vector.shape_cast %0 : vector<1x16x64xbf16> to vector<16x64xbf16>
    %c0_2 = arith.constant 0 : index
    %c0_3 = arith.constant 0 : index
    %c0_4 = arith.constant 0 : index
    %2 = vector.load %arg3[%c0_2, %c0_3, %c0_4] : memref<1x16x128xbf16, #tpu.memory_space<vmem>>, vector<1x16x128xbf16>
    %3 = vector.shape_cast %2 : vector<1x16x128xbf16> to vector<16x128xbf16>
    %4 = vector.extract_strided_slice %1 {offsets = [0, 0], sizes = [16, 16], strides = [1, 1]} : vector<16x64xbf16> to vector<16x16xbf16>
    %5 = vector.extract_strided_slice %3 {offsets = [0, 0], sizes = [16, 16], strides = [1, 1]} : vector<16x128xbf16> to vector<16x16xbf16>
    %6 = vector.extract_strided_slice %3 {offsets = [0, 64], sizes = [16, 16], strides = [1, 1]} : vector<16x128xbf16> to vector<16x16xbf16>
    %cst = arith.constant dense<0.000000e+00> : vector<16x16xf32>
    %7 = tpu.matmul %4, %5, %cst {dimension_numbers = #tpu.dot_dimension_numbers<[1], [1], [0], [0], [0, 0, 1, 0], [], []>} : vector<16x16xbf16>, vector<16x16xbf16>, vector<16x16xf32> -> vector<16x16xf32>
    %cst_5 = arith.constant dense<0xFF800000> : vector<16xf32>
    %8 = vector.multi_reduction <maximumf>, %7, %cst_5 [1] : vector<16x16xf32> to vector<16xf32>
    %9 = vector.shape_cast %8 : vector<16xf32> to vector<16x1xf32>
    %10 = vector.broadcast %9 : vector<16x1xf32> to vector<16x16xf32>
    %11 = arith.subf %7, %10 : vector<16x16xf32>
    %12 = math.exp %11 : vector<16x16xf32>
    %cst_6 = arith.constant dense<0.000000e+00> : vector<16xf32>
    %13 = vector.multi_reduction <add>, %12, %cst_6 [1] : vector<16x16xf32> to vector<16xf32>
    %14 = vector.shape_cast %13 : vector<16xf32> to vector<16x1xf32>
    %15 = tpu.reciprocal %14 {approx = true} : vector<16x1xf32> -> vector<16x1xf32>
    %16 = arith.truncf %12 : vector<16x16xf32> to vector<16x16xbf16>
    %cst_7 = arith.constant dense<0.000000e+00> : vector<16x16xf32>
    %17 = tpu.matmul %16, %6, %cst_7 {dimension_numbers = #tpu.dot_dimension_numbers<[1], [0], [0], [1], [0, 0, 1, 1], [], []>} : vector<16x16xbf16>, vector<16x16xbf16>, vector<16x16xf32> -> vector<16x16xf32>
    %18 = vector.broadcast %15 : vector<16x1xf32> to vector<16x16xf32>
    %19 = arith.mulf %17, %18 : vector<16x16xf32>
    %20 = vector.broadcast %15 : vector<16x1xf32> to vector<16x16xf32>
    %21 = arith.mulf %12, %20 : vector<16x16xf32>
    %22 = vector.extract_strided_slice %1 {offsets = [0, 16], sizes = [16, 16], strides = [1, 1]} : vector<16x64xbf16> to vector<16x16xbf16>
    %23 = vector.extract_strided_slice %3 {offsets = [0, 16], sizes = [16, 16], strides = [1, 1]} : vector<16x128xbf16> to vector<16x16xbf16>
    %24 = vector.extract_strided_slice %3 {offsets = [0, 80], sizes = [16, 16], strides = [1, 1]} : vector<16x128xbf16> to vector<16x16xbf16>
    %cst_8 = arith.constant dense<0.000000e+00> : vector<16x16xf32>
    %25 = tpu.matmul %22, %23, %cst_8 {dimension_numbers = #tpu.dot_dimension_numbers<[1], [1], [0], [0], [0, 0, 1, 0], [], []>} : vector<16x16xbf16>, vector<16x16xbf16>, vector<16x16xf32> -> vector<16x16xf32>
    %cst_9 = arith.constant dense<0xFF800000> : vector<16xf32>
    %26 = vector.multi_reduction <maximumf>, %25, %cst_9 [1] : vector<16x16xf32> to vector<16xf32>
    %27 = vector.shape_cast %26 : vector<16xf32> to vector<16x1xf32>
    %28 = vector.broadcast %27 : vector<16x1xf32> to vector<16x16xf32>
    %29 = arith.subf %25, %28 : vector<16x16xf32>
    %30 = math.exp %29 : vector<16x16xf32>
    %cst_10 = arith.constant dense<0.000000e+00> : vector<16xf32>
    %31 = vector.multi_reduction <add>, %30, %cst_10 [1] : vector<16x16xf32> to vector<16xf32>
    %32 = vector.shape_cast %31 : vector<16xf32> to vector<16x1xf32>
    %33 = tpu.reciprocal %32 {approx = true} : vector<16x1xf32> -> vector<16x1xf32>
    %34 = arith.truncf %30 : vector<16x16xf32> to vector<16x16xbf16>
    %cst_11 = arith.constant dense<0.000000e+00> : vector<16x16xf32>
    %35 = tpu.matmul %34, %24, %cst_11 {dimension_numbers = #tpu.dot_dimension_numbers<[1], [0], [0], [1], [0, 0, 1, 1], [], []>} : vector<16x16xbf16>, vector<16x16xbf16>, vector<16x16xf32> -> vector<16x16xf32>
    %36 = vector.broadcast %33 : vector<16x1xf32> to vector<16x16xf32>
    %37 = arith.mulf %35, %36 : vector<16x16xf32>
    %38 = vector.extract_strided_slice %1 {offsets = [0, 32], sizes = [16, 16], strides = [1, 1]} : vector<16x64xbf16> to vector<16x16xbf16>
    %39 = vector.extract_strided_slice %3 {offsets = [0, 32], sizes = [16, 16], strides = [1, 1]} : vector<16x128xbf16> to vector<16x16xbf16>
    %40 = vector.extract_strided_slice %3 {offsets = [0, 96], sizes = [16, 16], strides = [1, 1]} : vector<16x128xbf16> to vector<16x16xbf16>
    %cst_12 = arith.constant dense<0.000000e+00> : vector<16x16xf32>
    %41 = tpu.matmul %38, %39, %cst_12 {dimension_numbers = #tpu.dot_dimension_numbers<[1], [1], [0], [0], [0, 0, 1, 0], [], []>} : vector<16x16xbf16>, vector<16x16xbf16>, vector<16x16xf32> -> vector<16x16xf32>
    %cst_13 = arith.constant dense<0xFF800000> : vector<16xf32>
    %42 = vector.multi_reduction <maximumf>, %41, %cst_13 [1] : vector<16x16xf32> to vector<16xf32>
    %43 = vector.shape_cast %42 : vector<16xf32> to vector<16x1xf32>
    %44 = vector.broadcast %43 : vector<16x1xf32> to vector<16x16xf32>
    %45 = arith.subf %41, %44 : vector<16x16xf32>
    %46 = math.exp %45 : vector<16x16xf32>
    %cst_14 = arith.constant dense<0.000000e+00> : vector<16xf32>
    %47 = vector.multi_reduction <add>, %46, %cst_14 [1] : vector<16x16xf32> to vector<16xf32>
    %48 = vector.shape_cast %47 : vector<16xf32> to vector<16x1xf32>
    %49 = tpu.reciprocal %48 {approx = true} : vector<16x1xf32> -> vector<16x1xf32>
    %50 = arith.truncf %46 : vector<16x16xf32> to vector<16x16xbf16>
    %cst_15 = arith.constant dense<0.000000e+00> : vector<16x16xf32>
    %51 = tpu.matmul %50, %40, %cst_15 {dimension_numbers = #tpu.dot_dimension_numbers<[1], [0], [0], [1], [0, 0, 1, 1], [], []>} : vector<16x16xbf16>, vector<16x16xbf16>, vector<16x16xf32> -> vector<16x16xf32>
    %52 = vector.broadcast %49 : vector<16x1xf32> to vector<16x16xf32>
    %53 = arith.mulf %51, %52 : vector<16x16xf32>
    %54 = vector.extract_strided_slice %1 {offsets = [0, 48], sizes = [16, 16], strides = [1, 1]} : vector<16x64xbf16> to vector<16x16xbf16>
    %55 = vector.extract_strided_slice %3 {offsets = [0, 48], sizes = [16, 16], strides = [1, 1]} : vector<16x128xbf16> to vector<16x16xbf16>
    %56 = vector.extract_strided_slice %3 {offsets = [0, 112], sizes = [16, 16], strides = [1, 1]} : vector<16x128xbf16> to vector<16x16xbf16>
    %cst_16 = arith.constant dense<0.000000e+00> : vector<16x16xf32>
    %57 = tpu.matmul %54, %55, %cst_16 {dimension_numbers = #tpu.dot_dimension_numbers<[1], [1], [0], [0], [0, 0, 1, 0], [], []>} : vector<16x16xbf16>, vector<16x16xbf16>, vector<16x16xf32> -> vector<16x16xf32>
    %cst_17 = arith.constant dense<0xFF800000> : vector<16xf32>
    %58 = vector.multi_reduction <maximumf>, %57, %cst_17 [1] : vector<16x16xf32> to vector<16xf32>
    %59 = vector.shape_cast %58 : vector<16xf32> to vector<16x1xf32>
    %60 = vector.broadcast %59 : vector<16x1xf32> to vector<16x16xf32>
    %61 = arith.subf %57, %60 : vector<16x16xf32>
    %62 = math.exp %61 : vector<16x16xf32>
    %cst_18 = arith.constant dense<0.000000e+00> : vector<16xf32>
    %63 = vector.multi_reduction <add>, %62, %cst_18 [1] : vector<16x16xf32> to vector<16xf32>
    %64 = vector.shape_cast %63 : vector<16xf32> to vector<16x1xf32>
    %65 = tpu.reciprocal %64 {approx = true} : vector<16x1xf32> -> vector<16x1xf32>
    %66 = arith.truncf %62 : vector<16x16xf32> to vector<16x16xbf16>
    %cst_19 = arith.constant dense<0.000000e+00> : vector<16x16xf32>
    %67 = tpu.matmul %66, %56, %cst_19 {dimension_numbers = #tpu.dot_dimension_numbers<[1], [0], [0], [1], [0, 0, 1, 1], [], []>} : vector<16x16xbf16>, vector<16x16xbf16>, vector<16x16xf32> -> vector<16x16xf32>
    %68 = vector.broadcast %65 : vector<16x1xf32> to vector<16x16xf32>
    %69 = arith.mulf %67, %68 : vector<16x16xf32>
    %70 = tpu.concatenate %19, %37, %53, %69 in 1 : vector<16x16xf32>, vector<16x16xf32>, vector<16x16xf32>, vector<16x16xf32> -> vector<16x64xf32>
    %71 = arith.truncf %70 : vector<16x64xf32> to vector<16x64xbf16>
    %c0_20 = arith.constant 0 : index
    %c0_21 = arith.constant 0 : index
    %c0_22 = arith.constant 0 : index
    %72 = vector.load %arg4[%c0_20, %c0_21, %c0_22] : memref<1x16x64xbf16, #tpu.memory_space<vmem>>, vector<1x16x64xbf16>
    %73 = vector.shape_cast %72 : vector<1x16x64xbf16> to vector<16x64xbf16>
    %74 = vector.shape_cast %71 : vector<16x64xbf16> to vector<1x16x64xbf16>
    tpu.vector_store %arg4[%c0_20, %c0_21, %c0_22], %74 {strides = array<i32>} : memref<1x16x64xbf16, #tpu.memory_space<vmem>>, vector<1x16x64xbf16>,
    %c0_23 = arith.constant 0 : index
    %c0_24 = arith.constant 0 : index
    %c0_25 = arith.constant 0 : index
    %75 = vector.load %arg5[%c0_23, %c0_24, %c0_25] : memref<1x16x16xf32, #tpu.memory_space<vmem>>, vector<1x16x16xf32>
    %76 = vector.shape_cast %75 : vector<1x16x16xf32> to vector<16x16xf32>
    %77 = vector.shape_cast %21 : vector<16x16xf32> to vector<1x16x16xf32>
    tpu.vector_store %arg5[%c0_23, %c0_24, %c0_25], %77 {strides = array<i32>} : memref<1x16x16xf32, #tpu.memory_space<vmem>>, vector<1x16x16xf32>,
    return
  }
  func.func @transform_0(%arg0: i32, %arg1: i32) -> (i32, i32, i32) {
    %c0_i32 = arith.constant 0 : i32
    %c0_i32_0 = arith.constant 0 : i32
    return %arg0, %arg1, %c0_i32 : i32, i32, i32
  }
  func.func @transform_1(%arg0: i32, %arg1: i32) -> (i32, i32, i32) {
    %c0_i32 = arith.constant 0 : i32
    %c0_i32_0 = arith.constant 0 : i32
    %c0_i32_1 = arith.constant 0 : i32
    return %arg0, %c0_i32, %c0_i32_0 : i32, i32, i32
  }
  func.func @transform_2(%arg0: i32, %arg1: i32) -> (i32, i32, i32) {
    %c0_i32 = arith.constant 0 : i32
    %c0_i32_0 = arith.constant 0 : i32
    return %arg0, %arg1, %c0_i32 : i32, i32, i32
  }
  func.func @transform_3(%arg0: i32, %arg1: i32) -> (i32, i32, i32) {
    %c0_i32 = arith.constant 0 : i32
    %c0_i32_0 = arith.constant 0 : i32
    return %arg0, %arg1, %c0_i32 : i32, i32, i32
  }
}

</mosaic_0001>

<llo_original>
// kernel: multi_headed_attention.7
$region0: #{multi_headed_attention.7}
  #allocation0 [shape = 'u32[]', space=smem, size = 0x4, offset = 0x4, fixed_abs, tag = 'smem constant byte address 0x4 - core index']
  #allocation1 [shape = 'u32[144,128]{1,0:T(1,128)}', space=vmem, size = 0x12000, scoped, tag = 'internal scratch']
  #allocation2 [shape = 'f32[32,64]{1,0:T(8,128)}', space=vmem, size = 0x4000, scoped, tag = 'scratch operand']
  %s0 = inlined_call_operand.vmem [shape: bf16[32,64], index: 0, kind: input, shape index: {}]
  %s1 = inlined_call_operand.vmem [shape: bf16[64,64], index: 1, kind: input, shape index: {}]
  %s2 = inlined_call_operand.vmem [shape: f32[1,64], index: 2, kind: input, shape index: {}]
  %s3 = inlined_call_operand.hbm [shape: f32[32,64], index: 3, kind: output, shape index: {}]
  %s4 = sld [smem:[#allocation0]]
  $region30: #{multi_headed_attention.7} parent=0
    _
  %s6 = ssub.s32 1, %s4
  %s7 = scalar_select 0, %s6, %s4
  $region1: #{multi_headed_attention.7} parent=0
    #allocation3 [shape = 'u8[16384]{0}', space=vmem, size = 0x4000, scoped, tag = 'output window, operand 0, single buffered']
    #allocation4 [shape = 's32[1]{0}', space=sflag, size = 0x4, scoped, tag = 'scoped memory for multi_headed_attention.7']
    %8 = vsyncpa [#allocation4], 0
    // Predicated region
    $region2: #{multi_headed_attention.7} parent=1 // pred_check
      _
    $region3: #{multi_headed_attention.7} parent=1 // pred_check_branch
      %10 = sbr.rel (0) target = $region5
    $region4: #{multi_headed_attention.7} parent=1 // pred_region
      _
    $region5: #{multi_headed_attention.7} parent=1 // pred_fallthru
      _
    // Predicated region
    $region6: #{multi_headed_attention.7} parent=1 // pred_check
      _
    $region7: #{multi_headed_attention.7} parent=1 // pred_check_branch
      %12 = sbr.rel (0) target = $region9
    $region8: #{multi_headed_attention.7} parent=1 // pred_region
      _
    $region9: #{multi_headed_attention.7} parent=1 // pred_fallthru
      _
    // Predicated region
    $region10: #{multi_headed_attention.7} parent=1 // pred_check
      _
    $region11: #{multi_headed_attention.7} parent=1 // pred_check_branch
      %14 = sbr.rel (0) target = $region13
    $region12: #{multi_headed_attention.7} parent=1 // pred_region
      _
    $region13: #{multi_headed_attention.7} parent=1 // pred_fallthru
      _
    %p16 = scmp.eq.s32.totalorder 0, 0
    // Predicated region
    $region14: #{multi_headed_attention.7} parent=1 // pred_check
      %p17 = pneg %p16
    $region15: #{multi_headed_attention.7} parent=1 // pred_check_branch
      %19 = sbr.rel (%p17) target = $region17
    $region16: #{multi_headed_attention.7} parent=1 // pred_region
      %vm20 = vcmask 523264
      %21 = vst.msk [vmem:[#allocation2] sm:$0xff] %vm20, 0.0
      %22 = vst.msk [vmem:[#allocation2 + $0x8] sm:$0xff] %vm20, 0.0
      %23 = vst.msk [vmem:[#allocation2 + $0x10] sm:$0xff] %vm20, 0.0
      %24 = vst.msk [vmem:[#allocation2 + $0x18] sm:$0xff] %vm20, 0.0
    $region17: #{multi_headed_attention.7} parent=1 // pred_fallthru
      _
    %v25 = vld [vmem:[%s0] sm:$0xf]
    %v26 = vld [vmem:[%s0 + $0x4] sm:$0xf]
    %v27 = vld [vmem:[%s0 + $0x8] sm:$0xf]
    %v28 = vld [vmem:[%s0 + $0xc] sm:$0xf]
    %v29 = vld [vmem:[#allocation2] sm:$0xff]
    %v30 = vld [vmem:[#allocation2 + $0x8] sm:$0xff]
    %v31 = vld [vmem:[#allocation2 + $0x10] sm:$0xff]
    %v32 = vld [vmem:[#allocation2 + $0x18] sm:$0xff]
    %v33 = vld [vmem:[%s1] sm:$0xf]
    %v34 = vld [vmem:[%s1 + $0x4] sm:$0xf]
    %v35 = vld [vmem:[%s1 + $0x8] sm:$0xf]
    %v36 = vld [vmem:[%s1 + $0xc] sm:$0xf]
    %v37 = vld [vmem:[%s1 + $0x10] sm:$0xf]
    %v38 = vld [vmem:[%s1 + $0x14] sm:$0xf]
    %v39 = vld [vmem:[%s1 + $0x18] sm:$0xf]
    %v40 = vld [vmem:[%s1 + $0x1c] sm:$0xf]
    %v45 = vunpack.c.l.b16 %v25
    %v46 = vunpack.c.l.b16 %v26
    %v47 = vunpack.c.l.b16 %v27
    %v48 = vunpack.c.l.b16 %v28
    %v49 = vpack.c.b16 %v46, %v45
    %v50 = vpack.c.b16 %v48, %v47
    %v59 = vunpack.c.l.b16 %v33
    %v60 = vunpack.c.l.b16 %v34
    %v61 = vunpack.c.l.b16 %v35
    %v62 = vunpack.c.l.b16 %v36
    %v63 = vunpack.c.l.b16 %v37
    %v64 = vunpack.c.l.b16 %v38
    %v65 = vunpack.c.l.b16 %v39
    %v66 = vunpack.c.l.b16 %v40
    %v67 = vpack.c.b16 %v60, %v59
    %v68 = vpack.c.b16 %v62, %v61
    %v69 = vpack.c.b16 %v64, %v63
    %v70 = vpack.c.b16 %v66, %v65
    %vm75 = vcmask 523264
    %v77 = vsel %vm75, %v49, 0
    %v80 = vsel %vm75, %v50, 0
    %82 = vmatprep.subr.bf16.mxu0 0
    %83 = vmatpush1.bf16.msra.mxu0 0
    %84 = vmatprep.subr.bf16.mxu0 0
    %85 = vmatpush1.bf16.msra.mxu0 0
    %86 = vmatprep.subr.bf16.mxu0 0
    %87 = vmatpush1.bf16.msra.mxu0 0
    %88 = vmatprep.subr.bf16.mxu0 0
    %89 = vmatpush1.bf16.msra.mxu0 0
    %90 = vmatprep.subr.bf16.mxu0 0
    %91 = vmatpush1.bf16.msra.mxu0 %v70
    %92 = vmatprep.subr.bf16.mxu0 0
    %93 = vmatpush1.bf16.msra.mxu0 %v69
    %94 = vmatprep.subr.bf16.mxu0 0
    %95 = vmatpush1.bf16.msra.mxu0 %v68
    %96 = vmatprep.subr.bf16.mxu0 0
    %97 = vmatpush1.bf16.msra.mxu0 %v67
    %98 = vmatprep.subr.bf16.mxu0 0
    %99 = vmatpush2.bf16.msra.mxu0 0
    %100 = vmatprep.subr.bf16.mxu0 0
    %101 = vmatpush2.bf16.msra.mxu0 0
    %102 = vmatprep.subr.bf16.mxu0 0
    %103 = vmatpush2.bf16.msra.mxu0 0
    %104 = vmatprep.subr.bf16.mxu0 0
    %105 = vmatpush2.bf16.msra.mxu0 0
    %106 = vmatprep.subr.bf16.mxu0 0
    %107 = vmatpush2.bf16.msra.mxu0 0
    %108 = vmatprep.subr.bf16.mxu0 0
    %109 = vmatpush2.bf16.msra.mxu0 0
    %110 = vmatprep.subr.bf16.mxu0 0
    %111 = vmatpush2.bf16.msra.mxu0 0
    %112 = vmatprep.subr.bf16.mxu0 0
    %113 = vmatpush2.bf16.msra.mxu0 0
    %114 = vmatprep.mubr.bf16.mxu0 0
    %115 = vmatmul.mubr.bf16.gmra.mxu0 %v77
    %v116 = vpop.f32.mrf.mxu0
    %v117 = vadd.f32 0.0, %v116
    %v118 = vpop.f32.mrf.mxu0
    %v119 = vpop.f32.mrf.mxu0
    %v120 = vadd.f32 0.0, %v119
    %v121 = vpop.f32.mrf.mxu0
    %122 = vmatprep.mubr.bf16.mxu0 0
    %123 = vmatmul.mubr.bf16.gmra.mxu0 %v80
    %v124 = vpop.f32.mrf.mxu0
    %v125 = vadd.f32 0.0, %v124
    %v126 = vpop.f32.mrf.mxu0
    %v127 = vpop.f32.mrf.mxu0
    %v128 = vadd.f32 0.0, %v127
    %v129 = vpop.f32.mrf.mxu0
    %130 = vdwg.mxu0
    %v131 = vadd.f32 %v29, %v117
    %v132 = vadd.f32 %v30, %v120
    %v133 = vadd.f32 %v31, %v125
    %v134 = vadd.f32 %v32, %v128
    %135 = vst.msk [vmem:[#allocation2] sm:$0xff] %vm75, %v131
    %136 = vst.msk [vmem:[#allocation2 + $0x8] sm:$0xff] %vm75, %v132
    %137 = vst.msk [vmem:[#allocation2 + $0x10] sm:$0xff] %vm75, %v133
    %138 = vst.msk [vmem:[#allocation2 + $0x18] sm:$0xff] %vm75, %v134
    // Predicated region
    $region18: #{multi_headed_attention.7} parent=1 // pred_check
      %p139 = pneg %p16
    $region19: #{multi_headed_attention.7} parent=1 // pred_check_branch
      %141 = sbr.rel (%p139) target = $region21
    $region20: #{multi_headed_attention.7} parent=1 // pred_region
      %v142 = vld [vmem:[#allocation2] sm:$0xff]
      %v143 = vld [vmem:[#allocation2 + $0x8] sm:$0xff]
      %v144 = vld [vmem:[#allocation2 + $0x10] sm:$0xff]
      %v145 = vld [vmem:[#allocation2 + $0x18] sm:$0xff]
      %v146 = vld [vmem:[%s2] sm:$0x1]
      %v148 = vlaneseq
      %v149 = vshrl.u32 %v148, 7
      %v150 = vsub.s32 0, %v149
      %v151 = vrot.slane %v146, %v150
      %v153 = vadd.f32 %v142, %v151
      %v154 = vadd.f32 %v143, %v151
      %v155 = vadd.f32 %v144, %v151
      %v156 = vadd.f32 %v145, %v151
      %157 = vst.msk [vmem:[#allocation3] sm:$0xff] %vm75, %v153
      %158 = vst.msk [vmem:[#allocation3 + $0x8] sm:$0xff] %vm75, %v154
      %159 = vst.msk [vmem:[#allocation3 + $0x10] sm:$0xff] %vm75, %v155
      %160 = vst.msk [vmem:[#allocation3 + $0x18] sm:$0xff] %vm75, %v156
    $region21: #{multi_headed_attention.7} parent=1 // pred_fallthru
      _
    // Predicated region
    $region22: #{multi_headed_attention.7} parent=1 // pred_check
      _
    $region23: #{multi_headed_attention.7} parent=1 // pred_check_branch
      %162 = sbr.rel (0) target = $region25
    $region24: #{multi_headed_attention.7} parent=1 // pred_region
      %s164 = ssub.s32 512, 512
      %165 = vsyncadd [#allocation4], %s164
      %s166 = sshll.u32 [#allocation3], 4
      %s167 = int_to_ptr.vmem [resolvable:$true] %s166
      %172 = dma.vmem_to_hbm [thread:$0]  %s167, 512, %s3, [#allocation4], 128, 128, 8
    $region25: #{multi_headed_attention.7} parent=1 // pred_fallthru
      _
    // Predicated region
    $region26: #{multi_headed_attention.7} parent=1 // pred_check
      _
    $region27: #{multi_headed_attention.7} parent=1 // pred_check_branch
      %174 = sbr.rel (0) target = $region29
    $region28: #{multi_headed_attention.7} parent=1 // pred_region
      %175 = dma.done [#allocation4], 512
    $region29: #{multi_headed_attention.7} parent=1 // pred_fallthru
      _
    %176 = vsyncpa [#allocation4], 1

// kernel: multi_headed_attention.6
$region0: #{multi_headed_attention.6}
  #allocation0 [shape = 'u32[]', space=smem, size = 0x4, offset = 0x4, fixed_abs, tag = 'smem constant byte address 0x4 - core index']
  #allocation1 [shape = 'u32[144,128]{1,0:T(1,128)}', space=vmem, size = 0x12000, scoped, tag = 'internal scratch']
  %s0 = inlined_call_operand.vmem [shape: bf16[2,16,64], index: 0, kind: input, shape index: {}]
  %s1 = inlined_call_operand.vmem [shape: bf16[2,16,128], index: 1, kind: input, shape index: {}]
  %s2 = inlined_call_operand.vmem [shape: bf16[2,16,64], index: 2, kind: output, shape index: {0}]
  %s3 = inlined_call_operand.hbm [shape: f32[2,16,16], index: 3, kind: output, shape index: {1}]
  %4 = xla_tuple %s2, %s3
  %s5 = sld [smem:[#allocation0]]
  $region49: #{multi_headed_attention.6} parent=0
    _
  %s7 = ssub.s32 1, %s5
  %s8 = scalar_select 0, %s7, %s5
  $region1: #{multi_headed_attention.6} parent=0
    #allocation2 [shape = 'u8[16384]{0}', space=vmem, size = 0x4000, scoped, tag = 'output window, operand 1']
    #allocation3 [shape = 's32[2]{0}', space=sflag, size = 0x8, scoped, tag = 'scoped memory for multi_headed_attention.6']
    %9 = vsyncpa [#allocation3], 0
    %s10 = scalar_lea.sflag [#allocation3], 1
    %11 = vsyncpa %s10, 0
    loop: start=0, step=1, limit=4
    $region2: #{multi_headed_attention.6} parent=1 // loop_pre_header
      _
    $region3: #{multi_headed_attention.6} parent=1 // loop_header
      %s13 = sphi 0, %s17
      %p14 = scmp.ge.s32.totalorder %s13, 4
      %s20 = sphi 0, %s32
      %s21 = sphi 0, %s28
      %s22 = sphi 0, %s20
      %s23 = sphi 0, %s21
      %s24 = sphi 0, %s22
      %s25 = sphi 0, %s23
      %s37 = sphi 0, %s39
      %s40 = sphi 0, %s37
      %s41 = sphi 0, %s40
      %s57 = sphi 0, %s41
      %s63 = sphi 0, %s65
      %s66 = sphi 0, %s63
      %s67 = sphi 0, %s66
      %s83 = sphi 0, %s67
      %s91 = sphi 0, %s93
      %s94 = sphi 0, %s91
      %s95 = sphi 0, %s94
      %s111 = sphi 0, %s95
      %s119 = sphi 0, %s121
      %s122 = sphi 0, %s119
      %s123 = sphi 0, %s122
      %s139 = sphi 0, %s123
    $region4: #{multi_headed_attention.6} parent=1 // loop_header_branch
      %16 = sbr.rel (%p14) target = $region8
    $region5: #{multi_headed_attention.6} parent=1 // loop_body
      %s18 = ssub.s32 %s13, 1
      %s19 = ssub.s32 %s13, 2
      %s26 = sadd.s32 1, %s21
      %p27 = scmp.ge.s32.totalorder %s26, 1
      %s28 = scalar_select %p27, 0, %s26
      %s29 = sadd.s32 1, %s20
      %s30 = scalar_select %p27, %s29, %s20
      %p31 = scmp.ge.s32.totalorder %s30, 2
      %s32 = scalar_select %p31, 0, %s30
      %s33 = ssub.s32 %s20, %s32
      %s34 = ssub.s32 %s21, %s28
      %s35 = sor.u32 %s33, %s34
      %p36 = scmp.eq.s32.totalorder %s35, 0
      %s38 = sadd.s32 %s37, 1
      %s39 = scalar_select %p36, %s37, %s38
      %p42 = pneg %p36
      %p43 = scmp.eq.s32.totalorder %s13, 1
      %p44 = por %p42, %p43
      %p45 = scmp.ne.s32.totalorder %s37, %s40
      %p46 = scmp.eq.s32.totalorder %s13, 0
      %p47 = por %p45, %p46
      %p48 = scmp.ne.s32.totalorder %s37, %s40
      %p49 = scmp.eq.s32.totalorder %s18, 1
      %p50 = por %p48, %p49
      %p51 = scmp.ne.s32.totalorder %s40, %s41
      %p52 = scmp.eq.s32.totalorder %s18, 0
      %p53 = por %p51, %p52
      %p54 = scmp.ne.s32.totalorder %s40, %s41
      %p55 = scmp.eq.s32.totalorder %s19, 1
      %p56 = por %p54, %p55
      %p58 = scmp.ne.s32.totalorder %s41, %s57
      %p59 = scmp.eq.s32.totalorder %s19, 0
      %p60 = por %p58, %p59
      %s61 = ssub.s32 %s20, %s32
      %p62 = scmp.eq.s32.totalorder %s61, 0
      %s64 = sadd.s32 %s63, 1
      %s65 = scalar_select %p62, %s63, %s64
      %p68 = pneg %p62
      %p69 = scmp.eq.s32.totalorder %s13, 1
      %p70 = por %p68, %p69
      %p71 = scmp.ne.s32.totalorder %s63, %s66
      %p72 = scmp.eq.s32.totalorder %s13, 0
      %p73 = por %p71, %p72
      %p74 = scmp.ne.s32.totalorder %s63, %s66
      %p75 = scmp.eq.s32.totalorder %s18, 1
      %p76 = por %p74, %p75
      %p77 = scmp.ne.s32.totalorder %s66, %s67
      %p78 = scmp.eq.s32.totalorder %s18, 0
      %p79 = por %p77, %p78
      %p80 = scmp.ne.s32.totalorder %s66, %s67
      %p81 = scmp.eq.s32.totalorder %s19, 1
      %p82 = por %p80, %p81
      %p84 = scmp.ne.s32.totalorder %s67, %s83
      %p85 = scmp.eq.s32.totalorder %s19, 0
      %p86 = por %p84, %p85
      %s87 = ssub.s32 %s20, %s32
      %s88 = ssub.s32 %s21, %s28
      %s89 = sor.u32 %s87, %s88
      %p90 = scmp.eq.s32.totalorder %s89, 0
      %s92 = sadd.s32 %s91, 1
      %s93 = scalar_select %p90, %s91, %s92
      %p96 = pneg %p90
      %p97 = scmp.eq.s32.totalorder %s13, 1
      %p98 = por %p96, %p97
      %p99 = scmp.ne.s32.totalorder %s91, %s94
      %p100 = scmp.eq.s32.totalorder %s13, 0
      %p101 = por %p99, %p100
      %p102 = scmp.ne.s32.totalorder %s91, %s94
      %p103 = scmp.eq.s32.totalorder %s18, 1
      %p104 = por %p102, %p103
      %p105 = scmp.ne.s32.totalorder %s94, %s95
      %p106 = scmp.eq.s32.totalorder %s18, 0
      %p107 = por %p105, %p106
      %p108 = scmp.ne.s32.totalorder %s94, %s95
      %p109 = scmp.eq.s32.totalorder %s19, 1
      %p110 = por %p108, %p109
      %p112 = scmp.ne.s32.totalorder %s95, %s111
      %p113 = scmp.eq.s32.totalorder %s19, 0
      %p114 = por %p112, %p113
      %s115 = ssub.s32 %s20, %s32
      %s116 = ssub.s32 %s21, %s28
      %s117 = sor.u32 %s115, %s116
      %p118 = scmp.eq.s32.totalorder %s117, 0
      %s120 = sadd.s32 %s119, 1
      %s121 = scalar_select %p118, %s119, %s120
      %p124 = pneg %p118
      %p125 = scmp.eq.s32.totalorder %s13, 1
      %p126 = por %p124, %p125
      %p127 = scmp.ne.s32.totalorder %s119, %s122
      %p128 = scmp.eq.s32.totalorder %s13, 0
      %p129 = por %p127, %p128
      %p130 = scmp.ne.s32.totalorder %s119, %s122
      %p131 = scmp.eq.s32.totalorder %s18, 1
      %p132 = por %p130, %p131
      %p133 = scmp.ne.s32.totalorder %s122, %s123
      %p134 = scmp.eq.s32.totalorder %s18, 0
      %p135 = por %p133, %p134
      %p136 = scmp.ne.s32.totalorder %s122, %s123
      %p137 = scmp.eq.s32.totalorder %s19, 1
      %p138 = por %p136, %p137
      %p140 = scmp.ne.s32.totalorder %s123, %s139
      %p141 = scmp.eq.s32.totalorder %s19, 0
      %p142 = por %p140, %p141
      %p143 = scmp.le.s32.totalorder 1, %s13
      %p144 = scmp.lt.s32.totalorder %s13, 3
      %p145 = pnand %p143, %p144
      %p146 = pneg %p145
      // Predicated region
      $region9: #{multi_headed_attention.6} parent=5 // pred_check
        _
      $region10: #{multi_headed_attention.6} parent=5 // pred_check_branch
        %148 = sbr.rel (%p145) target = $region12
      $region11: #{multi_headed_attention.6} parent=5 // pred_region
        %s149 = ssub.s32 %s13, 1
      $region12: #{multi_headed_attention.6} parent=5 // pred_fallthru
        _
      %p150 = scmp.lt.s32.totalorder %s13, 2
      // Predicated region
      $region13: #{multi_headed_attention.6} parent=5 // pred_check
        %p151 = pneg %p150
      $region14: #{multi_headed_attention.6} parent=5 // pred_check_branch
        %153 = sbr.rel (%p151) target = $region16
      $region15: #{multi_headed_attention.6} parent=5 // pred_region
        // Predicated region
        $region17: #{multi_headed_attention.6} parent=15 // pred_check
          %p154 = pneg %p47
        $region18: #{multi_headed_attention.6} parent=15 // pred_check_branch
          %156 = sbr.rel (%p154) target = $region20
        $region19: #{multi_headed_attention.6} parent=15 // pred_region
          %s157 = smul.u32 2, %s21
          %p158 = scmp.lt.s32.totalorder %s20, 1
          %s159 = scalar_select %p158, %s20, 1
          %p160 = scmp.lt.s32.totalorder %s157, 1
          %s161 = scalar_select %p160, %s157, 1
          %s162 = smul.addr %s159, 2
          %s163 = sadd.s32 %s161, %s162
          %s164 = smul.addr %s163, 4
          %s165 = scalar_lea.vmem %s0, %s164
          %s166 = smul.u32 2, %s21
        $region20: #{multi_headed_attention.6} parent=15 // pred_fallthru
          _
        // Predicated region
        $region21: #{multi_headed_attention.6} parent=15 // pred_check
          %p167 = pneg %p73
        $region22: #{multi_headed_attention.6} parent=15 // pred_check_branch
          %169 = sbr.rel (%p167) target = $region24
        $region23: #{multi_headed_attention.6} parent=15 // pred_region
          %p170 = scmp.lt.s32.totalorder %s20, 1
          %s171 = scalar_select %p170, %s20, 1
          %s172 = smul.addr %s171, 2
          %s173 = smul.addr %s172, 4
          %s174 = scalar_lea.vmem %s1, %s173
        $region24: #{multi_headed_attention.6} parent=15 // pred_fallthru
          _
      $region16: #{multi_headed_attention.6} parent=5 // pred_fallthru
        _
      %p175 = scmp.le.s32.totalorder 1, %s13
      %p176 = scmp.lt.s32.totalorder %s13, 3
      %p177 = pnand %p175, %p176
      %p178 = pneg %p177
      // Predicated region
      $region25: #{multi_headed_attention.6} parent=5 // pred_check
        _
      $region26: #{multi_headed_attention.6} parent=5 // pred_check_branch
        %180 = sbr.rel (%p177) target = $region28
      $region27: #{multi_headed_attention.6} parent=5 // pred_region
        %s181 = ssub.s32 %s13, 1
        %s182 = smul.u32 2, %s23
        %p183 = scmp.lt.s32.totalorder %s22, 1
        %s184 = scalar_select %p183, %s22, 1
        %p185 = scmp.lt.s32.totalorder %s182, 1
        %s186 = scalar_select %p185, %s182, 1
        %s187 = smul.addr %s184, 2
        %s188 = sadd.s32 %s186, %s187
        %s189 = smul.addr %s188, 4
        %s190 = scalar_lea.vmem %s0, %s189
        %p191 = pneg %p53
        %p192 = pneg %p50
        %p193 = scmp.lt.s32.totalorder %s22, 1
        %s194 = scalar_select %p193, %s22, 1
        %s195 = smul.addr %s194, 2
        %s196 = smul.addr %s195, 4
        %s197 = scalar_lea.vmem %s1, %s196
        %p198 = pneg %p79
        %p199 = pneg %p76
        %p200 = pneg %p107
        %p201 = pneg %p104
        %s202 = smul.u32 2, %s23
        %p203 = scmp.lt.s32.totalorder %s22, 1
        %s204 = scalar_select %p203, %s22, 1
        %p205 = scmp.lt.s32.totalorder %s202, 1
        %s206 = scalar_select %p205, %s202, 1
        %s207 = smul.addr %s204, 2
        %s208 = sadd.s32 %s206, %s207
        %s209 = smul.addr %s208, 4
        %s210 = scalar_lea.vmem %s2, %s209
        %p211 = pneg %p135
        %p212 = pneg %p132
        %s213 = sand.u32 %s122, 1
        %s214 = scalar_lea.sflag [#allocation3], %s213
        %s215 = sand.u32 %s122, 1
        %s216 = smul.addr %s215, 16
        %s217 = scalar_lea.vmem [#allocation2], %s216
        %s218 = smul.u32 2, %s23
        %p219 = scmp.lt.s32.totalorder %s22, 1
        %s220 = scalar_select %p219, %s22, 1
        %p221 = scmp.lt.s32.totalorder %s218, 1
        %s222 = scalar_select %p221, %s218, 1
        %s223 = smul.addr %s220, 2
        %s224 = sadd.s32 %s222, %s223
        %s225 = smul.addr %s224, 4
        %s226 = scalar_lea.vmem %s0, %s225
        %s227 = smul.u32 2, %s23
        %p228 = scmp.lt.s32.totalorder %s22, 1
        %s229 = scalar_select %p228, %s22, 1
        %s230 = smul.addr %s229, 2
        %s231 = smul.addr %s230, 4
        %s232 = scalar_lea.vmem %s1, %s231
        %s233 = smul.u32 2, %s23
        %p234 = scmp.lt.s32.totalorder %s22, 1
        %s235 = scalar_select %p234, %s22, 1
        %p236 = scmp.lt.s32.totalorder %s233, 1
        %s237 = scalar_select %p236, %s233, 1
        %s238 = smul.addr %s235, 2
        %s239 = sadd.s32 %s237, %s238
        %s240 = smul.addr %s239, 4
        %s241 = scalar_lea.vmem %s2, %s240
        %s242 = smul.u32 2, %s23
        %s243 = smul.u32 2, %s23
        %v245 = vld [vmem:[%s226] sm:$0xf]
        %v246 = vld [vmem:[%s226 + $0x4] sm:$0xf]
        %v247 = vld [vmem:[%s232] sm:$0xf]
        %v248 = vld [vmem:[%s232 + $0x4] sm:$0xf]
        %v251 = vunpack.c.l.b16 %v245
        %v252 = vunpack.c.l.b16 %v246
        %v253 = vpack.c.b16 %v252, %v251
        %v256 = vunpack.c.l.b16 %v247
        %v257 = vunpack.c.l.b16 %v248
        %v258 = vpack.c.b16 %v257, %v256
        %vm259 = vcmask 130048
        %v261 = vsel %vm259, %v253, 0
        %v264 = vsel %vm259, %v258, 0
        %266 = vmatprep.subr.bf16.mxu0 0
        %267 = vmatpush1.bf16.xpose.msra.mxu0 0
        %268 = vmatprep.subr.bf16.mxu0 0
        %269 = vmatpush1.bf16.xpose.msra.mxu0 0
        %270 = vmatprep.subr.bf16.mxu0 0
        %271 = vmatpush1.bf16.xpose.msra.mxu0 0
        %272 = vmatprep.subr.bf16.mxu0 0
        %273 = vmatpush1.bf16.xpose.msra.mxu0 0
        %274 = vmatprep.subr.bf16.mxu0 0
        %275 = vmatpush1.bf16.xpose.msra.mxu0 0
        %276 = vmatprep.subr.bf16.mxu0 0
        %277 = vmatpush1.bf16.xpose.msra.mxu0 0
        %278 = vmatprep.subr.bf16.mxu0 0
        %279 = vmatpush1.bf16.xpose.msra.mxu0 0
        %280 = vmatprep.subr.bf16.mxu0 0
        %281 = vmatpush1.bf16.xpose.msra.mxu0 %v264
        %282 = vmatprep.subr.bf16.mxu0 0
        %283 = vmatpush2.bf16.xpose.msra.mxu0 0
        %284 = vmatprep.subr.bf16.mxu0 0
        %285 = vmatpush2.bf16.xpose.msra.mxu0 0
        %286 = vmatprep.subr.bf16.mxu0 0
        %287 = vmatpush2.bf16.xpose.msra.mxu0 0
        %288 = vmatprep.subr.bf16.mxu0 0
        %289 = vmatpush2.bf16.xpose.msra.mxu0 0
        %290 = vmatprep.subr.bf16.mxu0 0
        %291 = vmatpush2.bf16.xpose.msra.mxu0 0
        %292 = vmatprep.subr.bf16.mxu0 0
        %293 = vmatpush2.bf16.xpose.msra.mxu0 0
        %294 = vmatprep.subr.bf16.mxu0 0
        %295 = vmatpush2.bf16.xpose.msra.mxu0 0
        %296 = vmatprep.subr.bf16.mxu0 0
        %297 = vmatpush2.bf16.xpose.msra.mxu0 0
        %298 = vmatprep.mubr.bf16.mxu0 0
        %299 = vmatmul.mubr.bf16.gmra.mxu0 %v261
        %v300 = vpop.f32.mrf.mxu0
        %v301 = vadd.f32 0.0, %v300
        %v302 = vpop.f32.mrf.mxu0
        %v303 = vpop.f32.mrf.mxu0
        %v304 = vadd.f32 0.0, %v303
        %v305 = vpop.f32.mrf.mxu0
        %306 = vdwg.mxu0
        %v307 = vsel %vm259, %v301, -inf
        %308 = vmax.xlane.f32.xlu0 %v307
        %v309 = vpop.xlane.xlu0 %308
        %v310 = vsel %vm259, %v304, -inf
        %311 = vmax.xlane.f32.xlu0 %v310
        %v312 = vpop.xlane.xlu0 %311
        %v313 = vsub.f32 %v301, %v309
        %v314 = vsub.f32 %v304, %v312
        %v315 = vmul.f32 %v313, 1.442695
        %v316 = vpow.pop %v315
        %v317 = vmul.f32 %v314, 1.442695
        %v318 = vpow.pop %v317
        %v319 = vsel %vm259, %v316, 0.0
        %320 = vadd.xlane.f32.xlu0 %v319
        %v321 = vpop.xlane.xlu0 %320
        %v322 = vsel %vm259, %v318, 0.0
        %323 = vadd.xlane.f32.xlu0 %v322
        %v324 = vpop.xlane.xlu0 %323
        %v325 = vrcp.pop %v321
        %v326 = vrcp.pop %v324
        %v327 = vpack.c.bf16 %v318, %v316
        %328 = vrot.lane.b32.xlu0 %v258, 64
        %v329 = vpop.permute.xlu0 %328
        %v332 = vsel %vm259, %v327, 0
        %334 = vmatprep.subr.bf16.mxu0 0
        %335 = vmatpush1.bf16.msra.mxu0 0
        %336 = vmatprep.subr.bf16.mxu0 0
        %337 = vmatpush1.bf16.msra.mxu0 0
        %338 = vmatprep.subr.bf16.mxu0 0
        %339 = vmatpush1.bf16.msra.mxu0 0
        %340 = vmatprep.subr.bf16.mxu0 0
        %341 = vmatpush1.bf16.msra.mxu0 0
        %342 = vmatprep.subr.bf16.mxu0 0
        %343 = vmatpush1.bf16.msra.mxu0 0
        %344 = vmatprep.subr.bf16.mxu0 0
        %345 = vmatpush1.bf16.msra.mxu0 0
        %346 = vmatprep.subr.bf16.mxu0 0
        %347 = vmatpush1.bf16.msra.mxu0 0
        %348 = vmatprep.subr.bf16.mxu0 0
        %349 = vmatpush1.bf16.msra.mxu0 %v329
        %350 = vmatprep.subr.bf16.mxu0 0
        %351 = vmatpush2.bf16.msra.mxu0 0
        %352 = vmatprep.subr.bf16.mxu0 0
        %353 = vmatpush2.bf16.msra.mxu0 0
        %354 = vmatprep.subr.bf16.mxu0 0
        %355 = vmatpush2.bf16.msra.mxu0 0
        %356 = vmatprep.subr.bf16.mxu0 0
        %357 = vmatpush2.bf16.msra.mxu0 0
        %358 = vmatprep.subr.bf16.mxu0 0
        %359 = vmatpush2.bf16.msra.mxu0 0
        %360 = vmatprep.subr.bf16.mxu0 0
        %361 = vmatpush2.bf16.msra.mxu0 0
        %362 = vmatprep.subr.bf16.mxu0 0
        %363 = vmatpush2.bf16.msra.mxu0 0
        %364 = vmatprep.subr.bf16.mxu0 0
        %365 = vmatpush2.bf16.msra.mxu0 0
        %366 = vmatprep.mubr.bf16.mxu0 0
        %367 = vmatmul.mubr.bf16.gmra.mxu0 %v332
        %v368 = vpop.f32.mrf.mxu0
        %v369 = vadd.f32 0.0, %v368
        %v370 = vpop.f32.mrf.mxu0
        %v371 = vpop.f32.mrf.mxu0
        %v372 = vadd.f32 0.0, %v371
        %v373 = vpop.f32.mrf.mxu0
        %374 = vdwg.mxu0
        %v375 = vmul.f32 %v369, %v325
        %v376 = vmul.f32 %v372, %v326
        %v377 = vmul.f32 %v316, %v325
        %v378 = vmul.f32 %v318, %v326
        %379 = vrot.lane.b32.xlu0 %v253, 112
        %v380 = vpop.permute.xlu0 %379
        %381 = vrot.lane.b32.xlu0 %v258, 112
        %v382 = vpop.permute.xlu0 %381
        %v384 = vsel %vm259, %v380, 0
        %v387 = vsel %vm259, %v382, 0
        %389 = vmatprep.subr.bf16.mxu0 0
        %390 = vmatpush1.bf16.xpose.msra.mxu0 0
        %391 = vmatprep.subr.bf16.mxu0 0
        %392 = vmatpush1.bf16.xpose.msra.mxu0 0
        %393 = vmatprep.subr.bf16.mxu0 0
        %394 = vmatpush1.bf16.xpose.msra.mxu0 0
        %395 = vmatprep.subr.bf16.mxu0 0
        %396 = vmatpush1.bf16.xpose.msra.mxu0 0
        %397 = vmatprep.subr.bf16.mxu0 0
        %398 = vmatpush1.bf16.xpose.msra.mxu0 0
        %399 = vmatprep.subr.bf16.mxu0 0
        %400 = vmatpush1.bf16.xpose.msra.mxu0 0
        %401 = vmatprep.subr.bf16.mxu0 0
        %402 = vmatpush1.bf16.xpose.msra.mxu0 0
        %403 = vmatprep.subr.bf16.mxu0 0
        %404 = vmatpush1.bf16.xpose.msra.mxu0 %v387
        %405 = vmatprep.subr.bf16.mxu0 0
        %406 = vmatpush2.bf16.xpose.msra.mxu0 0
        %407 = vmatprep.subr.bf16.mxu0 0
        %408 = vmatpush2.bf16.xpose.msra.mxu0 0
        %409 = vmatprep.subr.bf16.mxu0 0
        %410 = vmatpush2.bf16.xpose.msra.mxu0 0
        %411 = vmatprep.subr.bf16.mxu0 0
        %412 = vmatpush2.bf16.xpose.msra.mxu0 0
        %413 = vmatprep.subr.bf16.mxu0 0
        %414 = vmatpush2.bf16.xpose.msra.mxu0 0
        %415 = vmatprep.subr.bf16.mxu0 0
        %416 = vmatpush2.bf16.xpose.msra.mxu0 0
        %417 = vmatprep.subr.bf16.mxu0 0
        %418 = vmatpush2.bf16.xpose.msra.mxu0 0
        %419 = vmatprep.subr.bf16.mxu0 0
        %420 = vmatpush2.bf16.xpose.msra.mxu0 0
        %421 = vmatprep.mubr.bf16.mxu0 0
        %422 = vmatmul.mubr.bf16.gmra.mxu0 %v384
        %v423 = vpop.f32.mrf.mxu0
        %v424 = vadd.f32 0.0, %v423
        %v425 = vpop.f32.mrf.mxu0
        %v426 = vpop.f32.mrf.mxu0
        %v427 = vadd.f32 0.0, %v426
        %v428 = vpop.f32.mrf.mxu0
        %429 = vdwg.mxu0
        %v430 = vsel %vm259, %v424, -inf
        %431 = vmax.xlane.f32.xlu0 %v430
        %v432 = vpop.xlane.xlu0 %431
        %v433 = vsel %vm259, %v427, -inf
        %434 = vmax.xlane.f32.xlu0 %v433
        %v435 = vpop.xlane.xlu0 %434
        %v436 = vsub.f32 %v424, %v432
        %v437 = vsub.f32 %v427, %v435
        %v438 = vmul.f32 %v436, 1.442695
        %v439 = vpow.pop %v438
        %v440 = vmul.f32 %v437, 1.442695
        %v441 = vpow.pop %v440
        %v442 = vsel %vm259, %v439, 0.0
        %443 = vadd.xlane.f32.xlu0 %v442
        %v444 = vpop.xlane.xlu0 %443
        %v445 = vsel %vm259, %v441, 0.0
        %446 = vadd.xlane.f32.xlu0 %v445
        %v447 = vpop.xlane.xlu0 %446
        %v448 = vrcp.pop %v444
        %v449 = vrcp.pop %v447
        %v450 = vpack.c.bf16 %v441, %v439
        %451 = vrot.lane.b32.xlu0 %v258, 48
        %v452 = vpop.permute.xlu0 %451
        %v455 = vsel %vm259, %v450, 0
        %457 = vmatprep.subr.bf16.mxu0 0
        %458 = vmatpush1.bf16.msra.mxu0 0
        %459 = vmatprep.subr.bf16.mxu0 0
        %460 = vmatpush1.bf16.msra.mxu0 0
        %461 = vmatprep.subr.bf16.mxu0 0
        %462 = vmatpush1.bf16.msra.mxu0 0
        %463 = vmatprep.subr.bf16.mxu0 0
        %464 = vmatpush1.bf16.msra.mxu0 0
        %465 = vmatprep.subr.bf16.mxu0 0
        %466 = vmatpush1.bf16.msra.mxu0 0
        %467 = vmatprep.subr.bf16.mxu0 0
        %468 = vmatpush1.bf16.msra.mxu0 0
        %469 = vmatprep.subr.bf16.mxu0 0
        %470 = vmatpush1.bf16.msra.mxu0 0
        %471 = vmatprep.subr.bf16.mxu0 0
        %472 = vmatpush1.bf16.msra.mxu0 %v452
        %473 = vmatprep.subr.bf16.mxu0 0
        %474 = vmatpush2.bf16.msra.mxu0 0
        %475 = vmatprep.subr.bf16.mxu0 0
        %476 = vmatpush2.bf16.msra.mxu0 0
        %477 = vmatprep.subr.bf16.mxu0 0
        %478 = vmatpush2.bf16.msra.mxu0 0
        %479 = vmatprep.subr.bf16.mxu0 0
        %480 = vmatpush2.bf16.msra.mxu0 0
        %481 = vmatprep.subr.bf16.mxu0 0
        %482 = vmatpush2.bf16.msra.mxu0 0
        %483 = vmatprep.subr.bf16.mxu0 0
        %484 = vmatpush2.bf16.msra.mxu0 0
        %485 = vmatprep.subr.bf16.mxu0 0
        %486 = vmatpush2.bf16.msra.mxu0 0
        %487 = vmatprep.subr.bf16.mxu0 0
        %488 = vmatpush2.bf16.msra.mxu0 0
        %489 = vmatprep.mubr.bf16.mxu0 0
        %490 = vmatmul.mubr.bf16.gmra.mxu0 %v455
        %v491 = vpop.f32.mrf.mxu0
        %v492 = vadd.f32 0.0, %v491
        %v493 = vpop.f32.mrf.mxu0
        %v494 = vpop.f32.mrf.mxu0
        %v495 = vadd.f32 0.0, %v494
        %v496 = vpop.f32.mrf.mxu0
        %497 = vdwg.mxu0
        %v498 = vmul.f32 %v492, %v448
        %v499 = vmul.f32 %v495, %v449
        %500 = vrot.lane.b32.xlu0 %v253, 96
        %v501 = vpop.permute.xlu0 %500
        %502 = vrot.lane.b32.xlu0 %v258, 96
        %v503 = vpop.permute.xlu0 %502
        %v505 = vsel %vm259, %v501, 0
        %v508 = vsel %vm259, %v503, 0
        %510 = vmatprep.subr.bf16.mxu0 0
        %511 = vmatpush1.bf16.xpose.msra.mxu0 0
        %512 = vmatprep.subr.bf16.mxu0 0
        %513 = vmatpush1.bf16.xpose.msra.mxu0 0
        %514 = vmatprep.subr.bf16.mxu0 0
        %515 = vmatpush1.bf16.xpose.msra.mxu0 0
        %516 = vmatprep.subr.bf16.mxu0 0
        %517 = vmatpush1.bf16.xpose.msra.mxu0 0
        %518 = vmatprep.subr.bf16.mxu0 0
        %519 = vmatpush1.bf16.xpose.msra.mxu0 0
        %520 = vmatprep.subr.bf16.mxu0 0
        %521 = vmatpush1.bf16.xpose.msra.mxu0 0
        %522 = vmatprep.subr.bf16.mxu0 0
        %523 = vmatpush1.bf16.xpose.msra.mxu0 0
        %524 = vmatprep.subr.bf16.mxu0 0
        %525 = vmatpush1.bf16.xpose.msra.mxu0 %v508
        %526 = vmatprep.subr.bf16.mxu0 0
        %527 = vmatpush2.bf16.xpose.msra.mxu0 0
        %528 = vmatprep.subr.bf16.mxu0 0
        %529 = vmatpush2.bf16.xpose.msra.mxu0 0
        %530 = vmatprep.subr.bf16.mxu0 0
        %531 = vmatpush2.bf16.xpose.msra.mxu0 0
        %532 = vmatprep.subr.bf16.mxu0 0
        %533 = vmatpush2.bf16.xpose.msra.mxu0 0
        %534 = vmatprep.subr.bf16.mxu0 0
        %535 = vmatpush2.bf16.xpose.msra.mxu0 0
        %536 = vmatprep.subr.bf16.mxu0 0
        %537 = vmatpush2.bf16.xpose.msra.mxu0 0
        %538 = vmatprep.subr.bf16.mxu0 0
        %539 = vmatpush2.bf16.xpose.msra.mxu0 0
        %540 = vmatprep.subr.bf16.mxu0 0
        %541 = vmatpush2.bf16.xpose.msra.mxu0 0
        %542 = vmatprep.mubr.bf16.mxu0 0
        %543 = vmatmul.mubr.bf16.gmra.mxu0 %v505
        %v544 = vpop.f32.mrf.mxu0
        %v545 = vadd.f32 0.0, %v544
        %v546 = vpop.f32.mrf.mxu0
        %v547 = vpop.f32.mrf.mxu0
        %v548 = vadd.f32 0.0, %v547
        %v549 = vpop.f32.mrf.mxu0
        %550 = vdwg.mxu0
        %v551 = vsel %vm259, %v545, -inf
        %552 = vmax.xlane.f32.xlu0 %v551
        %v553 = vpop.xlane.xlu0 %552
        %v554 = vsel %vm259, %v548, -inf
        %555 = vmax.xlane.f32.xlu0 %v554
        %v556 = vpop.xlane.xlu0 %555
        %v557 = vsub.f32 %v545, %v553
        %v558 = vsub.f32 %v548, %v556
        %v559 = vmul.f32 %v557, 1.442695
        %v560 = vpow.pop %v559
        %v561 = vmul.f32 %v558, 1.442695
        %v562 = vpow.pop %v561
        %v563 = vsel %vm259, %v560, 0.0
        %564 = vadd.xlane.f32.xlu0 %v563
        %v565 = vpop.xlane.xlu0 %564
        %v566 = vsel %vm259, %v562, 0.0
        %567 = vadd.xlane.f32.xlu0 %v566
        %v568 = vpop.xlane.xlu0 %567
        %v569 = vrcp.pop %v565
        %v570 = vrcp.pop %v568
        %v571 = vpack.c.bf16 %v562, %v560
        %572 = vrot.lane.b32.xlu0 %v258, 32
        %v573 = vpop.permute.xlu0 %572
        %v576 = vsel %vm259, %v571, 0
        %578 = vmatprep.subr.bf16.mxu0 0
        %579 = vmatpush1.bf16.msra.mxu0 0
        %580 = vmatprep.subr.bf16.mxu0 0
        %581 = vmatpush1.bf16.msra.mxu0 0
        %582 = vmatprep.subr.bf16.mxu0 0
        %583 = vmatpush1.bf16.msra.mxu0 0
        %584 = vmatprep.subr.bf16.mxu0 0
        %585 = vmatpush1.bf16.msra.mxu0 0
        %586 = vmatprep.subr.bf16.mxu0 0
        %587 = vmatpush1.bf16.msra.mxu0 0
        %588 = vmatprep.subr.bf16.mxu0 0
        %589 = vmatpush1.bf16.msra.mxu0 0
        %590 = vmatprep.subr.bf16.mxu0 0
        %591 = vmatpush1.bf16.msra.mxu0 0
        %592 = vmatprep.subr.bf16.mxu0 0
        %593 = vmatpush1.bf16.msra.mxu0 %v573
        %594 = vmatprep.subr.bf16.mxu0 0
        %595 = vmatpush2.bf16.msra.mxu0 0
        %596 = vmatprep.subr.bf16.mxu0 0
        %597 = vmatpush2.bf16.msra.mxu0 0
        %598 = vmatprep.subr.bf16.mxu0 0
        %599 = vmatpush2.bf16.msra.mxu0 0
        %600 = vmatprep.subr.bf16.mxu0 0
        %601 = vmatpush2.bf16.msra.mxu0 0
        %602 = vmatprep.subr.bf16.mxu0 0
        %603 = vmatpush2.bf16.msra.mxu0 0
        %604 = vmatprep.subr.bf16.mxu0 0
        %605 = vmatpush2.bf16.msra.mxu0 0
        %606 = vmatprep.subr.bf16.mxu0 0
        %607 = vmatpush2.bf16.msra.mxu0 0
        %608 = vmatprep.subr.bf16.mxu0 0
        %609 = vmatpush2.bf16.msra.mxu0 0
        %610 = vmatprep.mubr.bf16.mxu0 0
        %611 = vmatmul.mubr.bf16.gmra.mxu0 %v576
        %v612 = vpop.f32.mrf.mxu0
        %v613 = vadd.f32 0.0, %v612
        %v614 = vpop.f32.mrf.mxu0
        %v615 = vpop.f32.mrf.mxu0
        %v616 = vadd.f32 0.0, %v615
        %v617 = vpop.f32.mrf.mxu0
        %618 = vdwg.mxu0
        %v619 = vmul.f32 %v613, %v569
        %v620 = vmul.f32 %v616, %v570
        %621 = vrot.lane.b32.xlu0 %v253, 80
        %v622 = vpop.permute.xlu0 %621
        %623 = vrot.lane.b32.xlu0 %v258, 80
        %v624 = vpop.permute.xlu0 %623
        %v626 = vsel %vm259, %v622, 0
        %v629 = vsel %vm259, %v624, 0
        %631 = vmatprep.subr.bf16.mxu0 0
        %632 = vmatpush1.bf16.xpose.msra.mxu0 0
        %633 = vmatprep.subr.bf16.mxu0 0
        %634 = vmatpush1.bf16.xpose.msra.mxu0 0
        %635 = vmatprep.subr.bf16.mxu0 0
        %636 = vmatpush1.bf16.xpose.msra.mxu0 0
        %637 = vmatprep.subr.bf16.mxu0 0
        %638 = vmatpush1.bf16.xpose.msra.mxu0 0
        %639 = vmatprep.subr.bf16.mxu0 0
        %640 = vmatpush1.bf16.xpose.msra.mxu0 0
        %641 = vmatprep.subr.bf16.mxu0 0
        %642 = vmatpush1.bf16.xpose.msra.mxu0 0
        %643 = vmatprep.subr.bf16.mxu0 0
        %644 = vmatpush1.bf16.xpose.msra.mxu0 0
        %645 = vmatprep.subr.bf16.mxu0 0
        %646 = vmatpush1.bf16.xpose.msra.mxu0 %v629
        %647 = vmatprep.subr.bf16.mxu0 0
        %648 = vmatpush2.bf16.xpose.msra.mxu0 0
        %649 = vmatprep.subr.bf16.mxu0 0
        %650 = vmatpush2.bf16.xpose.msra.mxu0 0
        %651 = vmatprep.subr.bf16.mxu0 0
        %652 = vmatpush2.bf16.xpose.msra.mxu0 0
        %653 = vmatprep.subr.bf16.mxu0 0
        %654 = vmatpush2.bf16.xpose.msra.mxu0 0
        %655 = vmatprep.subr.bf16.mxu0 0
        %656 = vmatpush2.bf16.xpose.msra.mxu0 0
        %657 = vmatprep.subr.bf16.mxu0 0
        %658 = vmatpush2.bf16.xpose.msra.mxu0 0
        %659 = vmatprep.subr.bf16.mxu0 0
        %660 = vmatpush2.bf16.xpose.msra.mxu0 0
        %661 = vmatprep.subr.bf16.mxu0 0
        %662 = vmatpush2.bf16.xpose.msra.mxu0 0
        %663 = vmatprep.mubr.bf16.mxu0 0
        %664 = vmatmul.mubr.bf16.gmra.mxu0 %v626
        %v665 = vpop.f32.mrf.mxu0
        %v666 = vadd.f32 0.0, %v665
        %v667 = vpop.f32.mrf.mxu0
        %v668 = vpop.f32.mrf.mxu0
        %v669 = vadd.f32 0.0, %v668
        %v670 = vpop.f32.mrf.mxu0
        %671 = vdwg.mxu0
        %v672 = vsel %vm259, %v666, -inf
        %673 = vmax.xlane.f32.xlu0 %v672
        %v674 = vpop.xlane.xlu0 %673
        %v675 = vsel %vm259, %v669, -inf
        %676 = vmax.xlane.f32.xlu0 %v675
        %v677 = vpop.xlane.xlu0 %676
        %v678 = vsub.f32 %v666, %v674
        %v679 = vsub.f32 %v669, %v677
        %v680 = vmul.f32 %v678, 1.442695
        %v681 = vpow.pop %v680
        %v682 = vmul.f32 %v679, 1.442695
        %v683 = vpow.pop %v682
        %v684 = vsel %vm259, %v681, 0.0
        %685 = vadd.xlane.f32.xlu0 %v684
        %v686 = vpop.xlane.xlu0 %685
        %v687 = vsel %vm259, %v683, 0.0
        %688 = vadd.xlane.f32.xlu0 %v687
        %v689 = vpop.xlane.xlu0 %688
        %v690 = vrcp.pop %v686
        %v691 = vrcp.pop %v689
        %v692 = vpack.c.bf16 %v683, %v681
        %693 = vrot.lane.b32.xlu0 %v258, 16
        %v694 = vpop.permute.xlu0 %693
        %v697 = vsel %vm259, %v692, 0
        %699 = vmatprep.subr.bf16.mxu0 0
        %700 = vmatpush1.bf16.msra.mxu0 0
        %701 = vmatprep.subr.bf16.mxu0 0
        %702 = vmatpush1.bf16.msra.mxu0 0
        %703 = vmatprep.subr.bf16.mxu0 0
        %704 = vmatpush1.bf16.msra.mxu0 0
        %705 = vmatprep.subr.bf16.mxu0 0
        %706 = vmatpush1.bf16.msra.mxu0 0
        %707 = vmatprep.subr.bf16.mxu0 0
        %708 = vmatpush1.bf16.msra.mxu0 0
        %709 = vmatprep.subr.bf16.mxu0 0
        %710 = vmatpush1.bf16.msra.mxu0 0
        %711 = vmatprep.subr.bf16.mxu0 0
        %712 = vmatpush1.bf16.msra.mxu0 0
        %713 = vmatprep.subr.bf16.mxu0 0
        %714 = vmatpush1.bf16.msra.mxu0 %v694
        %715 = vmatprep.subr.bf16.mxu0 0
        %716 = vmatpush2.bf16.msra.mxu0 0
        %717 = vmatprep.subr.bf16.mxu0 0
        %718 = vmatpush2.bf16.msra.mxu0 0
        %719 = vmatprep.subr.bf16.mxu0 0
        %720 = vmatpush2.bf16.msra.mxu0 0
        %721 = vmatprep.subr.bf16.mxu0 0
        %722 = vmatpush2.bf16.msra.mxu0 0
        %723 = vmatprep.subr.bf16.mxu0 0
        %724 = vmatpush2.bf16.msra.mxu0 0
        %725 = vmatprep.subr.bf16.mxu0 0
        %726 = vmatpush2.bf16.msra.mxu0 0
        %727 = vmatprep.subr.bf16.mxu0 0
        %728 = vmatpush2.bf16.msra.mxu0 0
        %729 = vmatprep.subr.bf16.mxu0 0
        %730 = vmatpush2.bf16.msra.mxu0 0
        %731 = vmatprep.mubr.bf16.mxu0 0
        %732 = vmatmul.mubr.bf16.gmra.mxu0 %v697
        %v733 = vpop.f32.mrf.mxu0
        %v734 = vadd.f32 0.0, %v733
        %v735 = vpop.f32.mrf.mxu0
        %v736 = vpop.f32.mrf.mxu0
        %v737 = vadd.f32 0.0, %v736
        %v738 = vpop.f32.mrf.mxu0
        %739 = vdwg.mxu0
        %v740 = vmul.f32 %v734, %v690
        %v741 = vmul.f32 %v737, %v691
        %744 = vrot.lane.b32.xlu0 %v498, 16
        %v745 = vpop.permute.xlu0 %744
        %746 = vrot.lane.b32.xlu0 %v499, 16
        %v747 = vpop.permute.xlu0 %746
        %752 = vrot.lane.b32.xlu0 %v619, 32
        %v753 = vpop.permute.xlu0 %752
        %754 = vrot.lane.b32.xlu0 %v620, 32
        %v755 = vpop.permute.xlu0 %754
        %760 = vrot.lane.b32.xlu0 %v740, 48
        %v761 = vpop.permute.xlu0 %760
        %762 = vrot.lane.b32.xlu0 %v741, 48
        %v763 = vpop.permute.xlu0 %762
        %v766 = vsel %vm259, %v375, %v745
        %v767 = vsel %vm259, %v376, %v747
        %vm768 = vcmask 261120
        %v769 = vsel %vm768, %v766, %v753
        %v770 = vsel %vm768, %v767, %v755
        %vm771 = vcmask 392192
        %v772 = vsel %vm771, %v769, %v761
        %v773 = vsel %vm771, %v770, %v763
        %v774 = vpack.c.bf16 %v773, %v772
        %v776 = vunpack.c.l.b16 %v774
        %v777 = vunpack.c.h.b16 %v774
        %v778 = vpack.c.b16 %v776, %v776
        %v779 = vpack.c.b16 %v777, %v777
        %vm782 = vcmask 519168
        %783 = vst.msk [vmem:[%s241] sm:$0xf] %vm782, %v778
        %784 = vst.msk [vmem:[%s241 + $0x4] sm:$0xf] %vm782, %v779
        %785 = vst.msk [vmem:[%s217] sm:$0xff] %vm259, %v377
        %786 = vst.msk [vmem:[%s217 + $0x8] sm:$0xff] %vm259, %v378
        %s787 = smul.u32 2, %s23
        %p788 = scmp.lt.s32.totalorder %s22, 1
        %s789 = scalar_select %p788, %s22, 1
        %p790 = scmp.lt.s32.totalorder %s787, 1
        %s791 = scalar_select %p790, %s787, 1
        %s792 = smul.addr %s789, 2
        %s793 = sadd.s32 %s791, %s792
        %s794 = smul.addr %s793, 4
        %s795 = scalar_lea.vmem %s2, %s794
        %s796 = sand.u32 %s122, 1
        %s797 = scalar_lea.sflag [#allocation3], %s796
        %s798 = sand.u32 %s122, 1
        %s799 = smul.addr %s798, 16
        %s800 = scalar_lea.vmem [#allocation2], %s799
        // Predicated region
        $region29: #{multi_headed_attention.6} parent=27 // pred_check
          %p801 = pneg %p104
        $region30: #{multi_headed_attention.6} parent=27 // pred_check_branch
          %803 = sbr.rel (%p801) target = $region32
        $region31: #{multi_headed_attention.6} parent=27 // pred_region
          %s804 = smul.u32 2, %s23
        $region32: #{multi_headed_attention.6} parent=27 // pred_fallthru
          _
        // Predicated region
        $region33: #{multi_headed_attention.6} parent=27 // pred_check
          %p805 = pneg %p132
        $region34: #{multi_headed_attention.6} parent=27 // pred_check_branch
          %807 = sbr.rel (%p805) target = $region36
        $region35: #{multi_headed_attention.6} parent=27 // pred_region
          %s808 = smul.u32 2, %s23
          %s810 = ssub.s32 256, 256
          %811 = vsyncadd %s797, %s810
          %s812 = smul.addr %s22, 2
          %s813 = sadd.s32 %s808, %s812
          %s814 = smul.addr %s813, 128
          %s815 = scalar_lea.hbm %s3, %s814
          %s816 = sshll.u32 %s800, 4
          %s817 = int_to_ptr.vmem [resolvable:$true] %s816
          %822 = dma.vmem_to_hbm [thread:$0]  %s817, 256, %s815, %s797, 128, 128, 8
        $region36: #{multi_headed_attention.6} parent=27 // pred_fallthru
          _
      $region28: #{multi_headed_attention.6} parent=5 // pred_fallthru
        _
      %p823 = scmp.le.s32.totalorder 2, %s13
      // Predicated region
      $region37: #{multi_headed_attention.6} parent=5 // pred_check
        %p824 = pneg %p823
      $region38: #{multi_headed_attention.6} parent=5 // pred_check_branch
        %826 = sbr.rel (%p824) target = $region40
      $region39: #{multi_headed_attention.6} parent=5 // pred_region
        %s827 = ssub.s32 %s13, 2
        // Predicated region
        $region41: #{multi_headed_attention.6} parent=39 // pred_check
          %p828 = pneg %p110
        $region42: #{multi_headed_attention.6} parent=39 // pred_check_branch
          %830 = sbr.rel (%p828) target = $region44
        $region43: #{multi_headed_attention.6} parent=39 // pred_region
          %s831 = smul.u32 2, %s25
          %p832 = scmp.lt.s32.totalorder %s24, 1
          %s833 = scalar_select %p832, %s24, 1
          %p834 = scmp.lt.s32.totalorder %s831, 1
          %s835 = scalar_select %p834, %s831, 1
          %s836 = smul.addr %s833, 2
          %s837 = sadd.s32 %s835, %s836
          %s838 = smul.addr %s837, 4
          %s839 = scalar_lea.vmem %s2, %s838
        $region44: #{multi_headed_attention.6} parent=39 // pred_fallthru
          _
        // Predicated region
        $region45: #{multi_headed_attention.6} parent=39 // pred_check
          %p840 = pneg %p138
        $region46: #{multi_headed_attention.6} parent=39 // pred_check_branch
          %842 = sbr.rel (%p840) target = $region48
        $region47: #{multi_headed_attention.6} parent=39 // pred_region
          %s843 = sand.u32 %s123, 1
          %s844 = scalar_lea.sflag [#allocation3], %s843
          %s845 = sand.u32 %s123, 1
          %s846 = smul.addr %s845, 16
          %s847 = scalar_lea.vmem [#allocation2], %s846
          %848 = dma.done %s844, 256
        $region48: #{multi_headed_attention.6} parent=39 // pred_fallthru
          _
      $region40: #{multi_headed_attention.6} parent=5 // pred_fallthru
        _
    $region6: #{multi_headed_attention.6} parent=1 // loop_footer
      %s17 = sadd.s32 1, %s13
    $region7: #{multi_headed_attention.6} parent=1 // loop_footer_branch
      %12 = sbr.rel target = $region3
    $region8: #{multi_headed_attention.6} parent=1 // loop_exit
      _
    %849 = vsyncpa [#allocation3], 1
    %s850 = scalar_lea.sflag [#allocation3], 1
    %851 = vsyncpa %s850, 1

// kernel: multi_headed_attention.5
$region0: #{multi_headed_attention.5}
  #allocation0 [shape = 'u32[]', space=smem, size = 0x4, offset = 0x4, fixed_abs, tag = 'smem constant byte address 0x4 - core index']
  #allocation1 [shape = 'u32[144,128]{1,0:T(1,128)}', space=vmem, size = 0x12000, scoped, tag = 'internal scratch']
  #allocation2 [shape = 'f32[32,128]{1,0:T(8,128)}', space=vmem, size = 0x4000, scoped, tag = 'scratch operand']
  %s0 = inlined_call_operand.hbm [shape: f32[32,64], index: 0, kind: input, shape index: {}]
  %s1 = inlined_call_operand.hbm [shape: bf16[64,128], index: 1, kind: input, shape index: {}]
  %s2 = inlined_call_operand.vmem [shape: f32[1,128], index: 2, kind: input, shape index: {}]
  %s3 = inlined_call_operand.vmem [shape: bf16[32,128], index: 3, kind: output, shape index: {}]
  %s4 = sld [smem:[#allocation0]]
  $region38: #{multi_headed_attention.5} parent=0
    _
  %s6 = ssub.s32 1, %s4
  %s7 = scalar_select 0, %s6, %s4
  $region1: #{multi_headed_attention.5} parent=0
    #allocation3 [shape = 'u8[16384]{0}', space=vmem, size = 0x4000, scoped, tag = 'input window, operand 0, single buffered']
    #allocation4 [shape = 's32[1]{0}', space=sflag, size = 0x4, scoped, tag = 'scoped memory for multi_headed_attention.5']
    #allocation5 [shape = 'u8[16384]{0}', space=vmem, size = 0x4000, scoped, tag = 'input window, operand 1, single buffered']
    #allocation6 [shape = 's32[1]{0}', space=sflag, size = 0x4, scoped, tag = 'scoped memory for multi_headed_attention.5']
    %8 = vsyncpa [#allocation4], 0
    %9 = vsyncpa [#allocation6], 0
    // Predicated region
    $region2: #{multi_headed_attention.5} parent=1 // pred_check
      _
    $region3: #{multi_headed_attention.5} parent=1 // pred_check_branch
      %11 = sbr.rel (0) target = $region5
    $region4: #{multi_headed_attention.5} parent=1 // pred_region
      %s13 = ssub.s32 512, 512
      %14 = vsyncadd [#allocation4], %s13
      %s15 = sshll.u32 [#allocation3], 4
      %s16 = int_to_ptr.vmem [resolvable:$true] %s15
      %21 = dma.hbm_to_vmem [thread:$0]  %s0, 512, %s16, [#allocation4], 128, 128, 8
    $region5: #{multi_headed_attention.5} parent=1 // pred_fallthru
      _
    // Predicated region
    $region6: #{multi_headed_attention.5} parent=1 // pred_check
      _
    $region7: #{multi_headed_attention.5} parent=1 // pred_check_branch
      %23 = sbr.rel (0) target = $region9
    $region8: #{multi_headed_attention.5} parent=1 // pred_region
      %s25 = ssub.s32 512, 512
      %26 = vsyncadd [#allocation6], %s25
      %s27 = sshll.u32 [#allocation5], 4
      %s28 = int_to_ptr.vmem [resolvable:$true] %s27
      %33 = dma.hbm_to_vmem [thread:$0]  %s1, 512, %s28, [#allocation6], 64, 64, 4
    $region9: #{multi_headed_attention.5} parent=1 // pred_fallthru
      _
    // Predicated region
    $region10: #{multi_headed_attention.5} parent=1 // pred_check
      _
    $region11: #{multi_headed_attention.5} parent=1 // pred_check_branch
      %35 = sbr.rel (0) target = $region13
    $region12: #{multi_headed_attention.5} parent=1 // pred_region
      _
    $region13: #{multi_headed_attention.5} parent=1 // pred_fallthru
      _
    // Predicated region
    $region14: #{multi_headed_attention.5} parent=1 // pred_check
      _
    $region15: #{multi_headed_attention.5} parent=1 // pred_check_branch
      %37 = sbr.rel (0) target = $region17
    $region16: #{multi_headed_attention.5} parent=1 // pred_region
      %38 = dma.done [#allocation4], 512
    $region17: #{multi_headed_attention.5} parent=1 // pred_fallthru
      _
    // Predicated region
    $region18: #{multi_headed_attention.5} parent=1 // pred_check
      _
    $region19: #{multi_headed_attention.5} parent=1 // pred_check_branch
      %40 = sbr.rel (0) target = $region21
    $region20: #{multi_headed_attention.5} parent=1 // pred_region
      %41 = dma.done [#allocation6], 512
    $region21: #{multi_headed_attention.5} parent=1 // pred_fallthru
      _
    %p43 = scmp.eq.s32.totalorder 0, 0
    // Predicated region
    $region22: #{multi_headed_attention.5} parent=1 // pred_check
      %p44 = pneg %p43
    $region23: #{multi_headed_attention.5} parent=1 // pred_check_branch
      %46 = sbr.rel (%p44) target = $region25
    $region24: #{multi_headed_attention.5} parent=1 // pred_region
      %47 = vst [vmem:[#allocation2] sm:$0xff] 0.0
      %48 = vst [vmem:[#allocation2 + $0x8] sm:$0xff] 0.0
      %49 = vst [vmem:[#allocation2 + $0x10] sm:$0xff] 0.0
      %50 = vst [vmem:[#allocation2 + $0x18] sm:$0xff] 0.0
    $region25: #{multi_headed_attention.5} parent=1 // pred_fallthru
      _
    %v51 = vld [vmem:[#allocation3] sm:$0xff]
    %v52 = vld [vmem:[#allocation3 + $0x8] sm:$0xff]
    %v53 = vld [vmem:[#allocation3 + $0x10] sm:$0xff]
    %v54 = vld [vmem:[#allocation3 + $0x18] sm:$0xff]
    %v55 = vpack.c.bf16 %v52, %v51
    %v56 = vpack.c.bf16 %v54, %v53
    %v57 = vld [vmem:[#allocation2] sm:$0xff]
    %v58 = vld [vmem:[#allocation2 + $0x8] sm:$0xff]
    %v59 = vld [vmem:[#allocation2 + $0x10] sm:$0xff]
    %v60 = vld [vmem:[#allocation2 + $0x18] sm:$0xff]
    %v61 = vld [vmem:[#allocation5] sm:$0xf]
    %v62 = vld [vmem:[#allocation5 + $0x4] sm:$0xf]
    %v63 = vld [vmem:[#allocation5 + $0x8] sm:$0xf]
    %v64 = vld [vmem:[#allocation5 + $0xc] sm:$0xf]
    %v65 = vld [vmem:[#allocation5 + $0x10] sm:$0xf]
    %v66 = vld [vmem:[#allocation5 + $0x14] sm:$0xf]
    %v67 = vld [vmem:[#allocation5 + $0x18] sm:$0xf]
    %v68 = vld [vmem:[#allocation5 + $0x1c] sm:$0xf]
    %v77 = vunpack.c.l.b16 %v61
    %v78 = vunpack.c.l.b16 %v62
    %v79 = vunpack.c.l.b16 %v63
    %v80 = vunpack.c.l.b16 %v64
    %v81 = vunpack.c.l.b16 %v65
    %v82 = vunpack.c.l.b16 %v66
    %v83 = vunpack.c.l.b16 %v67
    %v84 = vunpack.c.l.b16 %v68
    %v85 = vpack.c.b16 %v78, %v77
    %v86 = vpack.c.b16 %v80, %v79
    %v87 = vpack.c.b16 %v82, %v81
    %v88 = vpack.c.b16 %v84, %v83
    %vm93 = vcmask 523264
    %v95 = vsel %vm93, %v55, 0
    %v98 = vsel %vm93, %v56, 0
    %100 = vmatprep.subr.bf16.mxu0 0
    %101 = vmatpush1.bf16.msra.mxu0 0
    %102 = vmatprep.subr.bf16.mxu0 0
    %103 = vmatpush1.bf16.msra.mxu0 0
    %104 = vmatprep.subr.bf16.mxu0 0
    %105 = vmatpush1.bf16.msra.mxu0 0
    %106 = vmatprep.subr.bf16.mxu0 0
    %107 = vmatpush1.bf16.msra.mxu0 0
    %108 = vmatprep.subr.bf16.mxu0 0
    %109 = vmatpush1.bf16.msra.mxu0 %v88
    %110 = vmatprep.subr.bf16.mxu0 0
    %111 = vmatpush1.bf16.msra.mxu0 %v87
    %112 = vmatprep.subr.bf16.mxu0 0
    %113 = vmatpush1.bf16.msra.mxu0 %v86
    %114 = vmatprep.subr.bf16.mxu0 0
    %115 = vmatpush1.bf16.msra.mxu0 %v85
    %116 = vmatprep.subr.bf16.mxu0 0
    %117 = vmatpush2.bf16.msra.mxu0 0
    %118 = vmatprep.subr.bf16.mxu0 0
    %119 = vmatpush2.bf16.msra.mxu0 0
    %120 = vmatprep.subr.bf16.mxu0 0
    %121 = vmatpush2.bf16.msra.mxu0 0
    %122 = vmatprep.subr.bf16.mxu0 0
    %123 = vmatpush2.bf16.msra.mxu0 0
    %124 = vmatprep.subr.bf16.mxu0 0
    %125 = vmatpush2.bf16.msra.mxu0 0
    %126 = vmatprep.subr.bf16.mxu0 0
    %127 = vmatpush2.bf16.msra.mxu0 0
    %128 = vmatprep.subr.bf16.mxu0 0
    %129 = vmatpush2.bf16.msra.mxu0 0
    %130 = vmatprep.subr.bf16.mxu0 0
    %131 = vmatpush2.bf16.msra.mxu0 0
    %132 = vmatprep.mubr.bf16.mxu0 0
    %133 = vmatmul.mubr.bf16.gmra.mxu0 %v95
    %v134 = vpop.f32.mrf.mxu0
    %v135 = vadd.f32 0.0, %v134
    %v136 = vpop.f32.mrf.mxu0
    %v137 = vpop.f32.mrf.mxu0
    %v138 = vadd.f32 0.0, %v137
    %v139 = vpop.f32.mrf.mxu0
    %140 = vmatprep.mubr.bf16.mxu0 0
    %141 = vmatmul.mubr.bf16.gmra.mxu0 %v98
    %v142 = vpop.f32.mrf.mxu0
    %v143 = vadd.f32 0.0, %v142
    %v144 = vpop.f32.mrf.mxu0
    %v145 = vpop.f32.mrf.mxu0
    %v146 = vadd.f32 0.0, %v145
    %v147 = vpop.f32.mrf.mxu0
    %148 = vdwg.mxu0
    %v149 = vadd.f32 %v57, %v135
    %v150 = vadd.f32 %v58, %v138
    %v151 = vadd.f32 %v59, %v143
    %v152 = vadd.f32 %v60, %v146
    %153 = vst [vmem:[#allocation2] sm:$0xff] %v149
    %154 = vst [vmem:[#allocation2 + $0x8] sm:$0xff] %v150
    %155 = vst [vmem:[#allocation2 + $0x10] sm:$0xff] %v151
    %156 = vst [vmem:[#allocation2 + $0x18] sm:$0xff] %v152
    // Predicated region
    $region26: #{multi_headed_attention.5} parent=1 // pred_check
      %p157 = pneg %p43
    $region27: #{multi_headed_attention.5} parent=1 // pred_check_branch
      %159 = sbr.rel (%p157) target = $region29
    $region28: #{multi_headed_attention.5} parent=1 // pred_region
      %v160 = vld [vmem:[#allocation2] sm:$0xff]
      %v161 = vld [vmem:[#allocation2 + $0x8] sm:$0xff]
      %v162 = vld [vmem:[#allocation2 + $0x10] sm:$0xff]
      %v163 = vld [vmem:[#allocation2 + $0x18] sm:$0xff]
      %v164 = vld [vmem:[%s2] sm:$0x1]
      %v166 = vlaneseq
      %v167 = vshrl.u32 %v166, 7
      %v168 = vsub.s32 0, %v167
      %v169 = vrot.slane %v164, %v168
      %v171 = vadd.f32 %v160, %v169
      %v172 = vadd.f32 %v161, %v169
      %v173 = vadd.f32 %v162, %v169
      %v174 = vadd.f32 %v163, %v169
      %v175 = vpack.c.bf16 %v172, %v171
      %v176 = vpack.c.bf16 %v174, %v173
      %v179 = vunpack.c.l.b16 %v175
      %v180 = vunpack.c.h.b16 %v175
      %v181 = vunpack.c.l.b16 %v176
      %v182 = vunpack.c.h.b16 %v176
      %v183 = vpack.c.b16 %v179, %v179
      %v184 = vpack.c.b16 %v180, %v180
      %v185 = vpack.c.b16 %v181, %v181
      %v186 = vpack.c.b16 %v182, %v182
      %191 = vst [vmem:[%s3] sm:$0xf] %v183
      %192 = vst [vmem:[%s3 + $0x4] sm:$0xf] %v184
      %193 = vst [vmem:[%s3 + $0x8] sm:$0xf] %v185
      %194 = vst [vmem:[%s3 + $0xc] sm:$0xf] %v186
    $region29: #{multi_headed_attention.5} parent=1 // pred_fallthru
      _
    // Predicated region
    $region30: #{multi_headed_attention.5} parent=1 // pred_check
      _
    $region31: #{multi_headed_attention.5} parent=1 // pred_check_branch
      %196 = sbr.rel (0) target = $region33
    $region32: #{multi_headed_attention.5} parent=1 // pred_region
      _
    $region33: #{multi_headed_attention.5} parent=1 // pred_fallthru
      _
    // Predicated region
    $region34: #{multi_headed_attention.5} parent=1 // pred_check
      _
    $region35: #{multi_headed_attention.5} parent=1 // pred_check_branch
      %198 = sbr.rel (0) target = $region37
    $region36: #{multi_headed_attention.5} parent=1 // pred_region
      _
    $region37: #{multi_headed_attention.5} parent=1 // pred_fallthru
      _
    %199 = vsyncpa [#allocation4], 1
    %200 = vsyncpa [#allocation6], 1

// kernel: multi_headed_attention.4
$region0: #{multi_headed_attention.4}
  #allocation0 [shape = 'u32[]', space=smem, size = 0x4, offset = 0x4, fixed_abs, tag = 'smem constant byte address 0x4 - core index']
  #allocation1 [shape = 'u32[144,128]{1,0:T(1,128)}', space=vmem, size = 0x12000, scoped, tag = 'internal scratch']
  #allocation2 [shape = 'f32[32,64]{1,0:T(8,128)}', space=vmem, size = 0x4000, scoped, tag = 'scratch operand']
  %s0 = inlined_call_operand.vmem [shape: f32[32,64], index: 0, kind: input, shape index: {}]
  %s1 = inlined_call_operand.vmem [shape: bf16[64,64], index: 1, kind: input, shape index: {}]
  %s2 = inlined_call_operand.vmem [shape: f32[1,64], index: 2, kind: input, shape index: {}]
  %s3 = inlined_call_operand.vmem [shape: bf16[32,64], index: 3, kind: output, shape index: {}]
  %s4 = sld [smem:[#allocation0]]
  $region30: #{multi_headed_attention.4} parent=0
    _
  %s6 = ssub.s32 1, %s4
  %s7 = scalar_select 0, %s6, %s4
  // Predicated region
  $region2: #{multi_headed_attention.4} parent=0 // pred_check
    _
  $region3: #{multi_headed_attention.4} parent=0 // pred_check_branch
    %9 = sbr.rel (0) target = $region5
  $region4: #{multi_headed_attention.4} parent=0 // pred_region
    _
  $region5: #{multi_headed_attention.4} parent=0 // pred_fallthru
    _
  // Predicated region
  $region6: #{multi_headed_attention.4} parent=0 // pred_check
    _
  $region7: #{multi_headed_attention.4} parent=0 // pred_check_branch
    %11 = sbr.rel (0) target = $region9
  $region8: #{multi_headed_attention.4} parent=0 // pred_region
    _
  $region9: #{multi_headed_attention.4} parent=0 // pred_fallthru
    _
  // Predicated region
  $region10: #{multi_headed_attention.4} parent=0 // pred_check
    _
  $region11: #{multi_headed_attention.4} parent=0 // pred_check_branch
    %13 = sbr.rel (0) target = $region13
  $region12: #{multi_headed_attention.4} parent=0 // pred_region
    _
  $region13: #{multi_headed_attention.4} parent=0 // pred_fallthru
    _
  %p15 = scmp.eq.s32.totalorder 0, 0
  // Predicated region
  $region14: #{multi_headed_attention.4} parent=0 // pred_check
    %p16 = pneg %p15
  $region15: #{multi_headed_attention.4} parent=0 // pred_check_branch
    %18 = sbr.rel (%p16) target = $region17
  $region16: #{multi_headed_attention.4} parent=0 // pred_region
    %vm19 = vcmask 523264
    %20 = vst.msk [vmem:[#allocation2] sm:$0xff] %vm19, 0.0
    %21 = vst.msk [vmem:[#allocation2 + $0x8] sm:$0xff] %vm19, 0.0
    %22 = vst.msk [vmem:[#allocation2 + $0x10] sm:$0xff] %vm19, 0.0
    %23 = vst.msk [vmem:[#allocation2 + $0x18] sm:$0xff] %vm19, 0.0
  $region17: #{multi_headed_attention.4} parent=0 // pred_fallthru
    _
  %v24 = vld [vmem:[%s0] sm:$0xff]
  %v25 = vld [vmem:[%s0 + $0x8] sm:$0xff]
  %v26 = vld [vmem:[%s0 + $0x10] sm:$0xff]
  %v27 = vld [vmem:[%s0 + $0x18] sm:$0xff]
  %v28 = vpack.c.bf16 %v25, %v24
  %v29 = vpack.c.bf16 %v27, %v26
  %v30 = vld [vmem:[#allocation2] sm:$0xff]
  %v31 = vld [vmem:[#allocation2 + $0x8] sm:$0xff]
  %v32 = vld [vmem:[#allocation2 + $0x10] sm:$0xff]
  %v33 = vld [vmem:[#allocation2 + $0x18] sm:$0xff]
  %v34 = vld [vmem:[%s1] sm:$0xf]
  %v35 = vld [vmem:[%s1 + $0x4] sm:$0xf]
  %v36 = vld [vmem:[%s1 + $0x8] sm:$0xf]
  %v37 = vld [vmem:[%s1 + $0xc] sm:$0xf]
  %v38 = vld [vmem:[%s1 + $0x10] sm:$0xf]
  %v39 = vld [vmem:[%s1 + $0x14] sm:$0xf]
  %v40 = vld [vmem:[%s1 + $0x18] sm:$0xf]
  %v41 = vld [vmem:[%s1 + $0x1c] sm:$0xf]
  %v50 = vunpack.c.l.b16 %v34
  %v51 = vunpack.c.l.b16 %v35
  %v52 = vunpack.c.l.b16 %v36
  %v53 = vunpack.c.l.b16 %v37
  %v54 = vunpack.c.l.b16 %v38
  %v55 = vunpack.c.l.b16 %v39
  %v56 = vunpack.c.l.b16 %v40
  %v57 = vunpack.c.l.b16 %v41
  %v58 = vpack.c.b16 %v51, %v50
  %v59 = vpack.c.b16 %v53, %v52
  %v60 = vpack.c.b16 %v55, %v54
  %v61 = vpack.c.b16 %v57, %v56
  %vm66 = vcmask 523264
  %v68 = vsel %vm66, %v28, 0
  %v71 = vsel %vm66, %v29, 0
  %73 = vmatprep.subr.bf16.mxu0 0
  %74 = vmatpush1.bf16.msra.mxu0 0
  %75 = vmatprep.subr.bf16.mxu0 0
  %76 = vmatpush1.bf16.msra.mxu0 0
  %77 = vmatprep.subr.bf16.mxu0 0
  %78 = vmatpush1.bf16.msra.mxu0 0
  %79 = vmatprep.subr.bf16.mxu0 0
  %80 = vmatpush1.bf16.msra.mxu0 0
  %81 = vmatprep.subr.bf16.mxu0 0
  %82 = vmatpush1.bf16.msra.mxu0 %v61
  %83 = vmatprep.subr.bf16.mxu0 0
  %84 = vmatpush1.bf16.msra.mxu0 %v60
  %85 = vmatprep.subr.bf16.mxu0 0
  %86 = vmatpush1.bf16.msra.mxu0 %v59
  %87 = vmatprep.subr.bf16.mxu0 0
  %88 = vmatpush1.bf16.msra.mxu0 %v58
  %89 = vmatprep.subr.bf16.mxu0 0
  %90 = vmatpush2.bf16.msra.mxu0 0
  %91 = vmatprep.subr.bf16.mxu0 0
  %92 = vmatpush2.bf16.msra.mxu0 0
  %93 = vmatprep.subr.bf16.mxu0 0
  %94 = vmatpush2.bf16.msra.mxu0 0
  %95 = vmatprep.subr.bf16.mxu0 0
  %96 = vmatpush2.bf16.msra.mxu0 0
  %97 = vmatprep.subr.bf16.mxu0 0
  %98 = vmatpush2.bf16.msra.mxu0 0
  %99 = vmatprep.subr.bf16.mxu0 0
  %100 = vmatpush2.bf16.msra.mxu0 0
  %101 = vmatprep.subr.bf16.mxu0 0
  %102 = vmatpush2.bf16.msra.mxu0 0
  %103 = vmatprep.subr.bf16.mxu0 0
  %104 = vmatpush2.bf16.msra.mxu0 0
  %105 = vmatprep.mubr.bf16.mxu0 0
  %106 = vmatmul.mubr.bf16.gmra.mxu0 %v68
  %v107 = vpop.f32.mrf.mxu0
  %v108 = vadd.f32 0.0, %v107
  %v109 = vpop.f32.mrf.mxu0
  %v110 = vpop.f32.mrf.mxu0
  %v111 = vadd.f32 0.0, %v110
  %v112 = vpop.f32.mrf.mxu0
  %113 = vmatprep.mubr.bf16.mxu0 0
  %114 = vmatmul.mubr.bf16.gmra.mxu0 %v71
  %v115 = vpop.f32.mrf.mxu0
  %v116 = vadd.f32 0.0, %v115
  %v117 = vpop.f32.mrf.mxu0
  %v118 = vpop.f32.mrf.mxu0
  %v119 = vadd.f32 0.0, %v118
  %v120 = vpop.f32.mrf.mxu0
  %121 = vdwg.mxu0
  %v122 = vadd.f32 %v30, %v108
  %v123 = vadd.f32 %v31, %v111
  %v124 = vadd.f32 %v32, %v116
  %v125 = vadd.f32 %v33, %v119
  %126 = vst.msk [vmem:[#allocation2] sm:$0xff] %vm66, %v122
  %127 = vst.msk [vmem:[#allocation2 + $0x8] sm:$0xff] %vm66, %v123
  %128 = vst.msk [vmem:[#allocation2 + $0x10] sm:$0xff] %vm66, %v124
  %129 = vst.msk [vmem:[#allocation2 + $0x18] sm:$0xff] %vm66, %v125
  // Predicated region
  $region18: #{multi_headed_attention.4} parent=0 // pred_check
    %p130 = pneg %p15
  $region19: #{multi_headed_attention.4} parent=0 // pred_check_branch
    %132 = sbr.rel (%p130) target = $region21
  $region20: #{multi_headed_attention.4} parent=0 // pred_region
    %v133 = vld [vmem:[#allocation2] sm:$0xff]
    %v134 = vld [vmem:[#allocation2 + $0x8] sm:$0xff]
    %v135 = vld [vmem:[#allocation2 + $0x10] sm:$0xff]
    %v136 = vld [vmem:[#allocation2 + $0x18] sm:$0xff]
    %v137 = vld [vmem:[%s2] sm:$0x1]
    %v139 = vlaneseq
    %v140 = vshrl.u32 %v139, 7
    %v141 = vsub.s32 0, %v140
    %v142 = vrot.slane %v137, %v141
    %v144 = vadd.f32 %v133, %v142
    %v145 = vadd.f32 %v134, %v142
    %v146 = vadd.f32 %v135, %v142
    %v147 = vadd.f32 %v136, %v142
    %v148 = vpack.c.bf16 %v145, %v144
    %v149 = vpack.c.bf16 %v147, %v146
    %v152 = vunpack.c.l.b16 %v148
    %v153 = vunpack.c.h.b16 %v148
    %v154 = vunpack.c.l.b16 %v149
    %v155 = vunpack.c.h.b16 %v149
    %v156 = vpack.c.b16 %v152, %v152
    %v157 = vpack.c.b16 %v153, %v153
    %v158 = vpack.c.b16 %v154, %v154
    %v159 = vpack.c.b16 %v155, %v155
    %vm164 = vcmask 519168
    %165 = vst.msk [vmem:[%s3] sm:$0xf] %vm164, %v156
    %166 = vst.msk [vmem:[%s3 + $0x4] sm:$0xf] %vm164, %v157
    %167 = vst.msk [vmem:[%s3 + $0x8] sm:$0xf] %vm164, %v158
    %168 = vst.msk [vmem:[%s3 + $0xc] sm:$0xf] %vm164, %v159
  $region21: #{multi_headed_attention.4} parent=0 // pred_fallthru
    _
  // Predicated region
  $region22: #{multi_headed_attention.4} parent=0 // pred_check
    _
  $region23: #{multi_headed_attention.4} parent=0 // pred_check_branch
    %170 = sbr.rel (0) target = $region25
  $region24: #{multi_headed_attention.4} parent=0 // pred_region
    _
  $region25: #{multi_headed_attention.4} parent=0 // pred_fallthru
    _
  // Predicated region
  $region26: #{multi_headed_attention.4} parent=0 // pred_check
    _
  $region27: #{multi_headed_attention.4} parent=0 // pred_check_branch
    %172 = sbr.rel (0) target = $region29
  $region28: #{multi_headed_attention.4} parent=0 // pred_region
    _
  $region29: #{multi_headed_attention.4} parent=0 // pred_fallthru
    _

</llo_original>
